<compile_context>
chip_gen: v7x
topology: tpu7x:2x2x1
jax: 0.10.0
libtpu: 0.0.40
codegen_flags: <defaults>
</compile_context>

<pallas_src>
import functools
import math

import jax
import jax.numpy as jnp
from jax import lax
from jax.experimental import pallas as pl
from jax.experimental.pallas import tpu as pltpu


def _resblock_kernel(
    y_ref,      # (1, C, N_ext)   center-zero-padded x, flattened, + tail
    cond_ref,   # (1, 1, N_pad)   conditioner, output-aligned (top-left padded)
    diff_ref,   # (1, 512, 1)     diffusion-step embedding (column)
    mask_ref,   # (1, N_ext)      interior (non-padding) indicator
    w_dp_ref,   # (C, 512)        diffusion Linear weight
    b_dp_ref,   # (C, 1)          diffusion Linear bias
    w_cat_ref,  # (2C, 9C)        dilated conv weights, taps concatenated on K
    b_gf_ref,   # (2C, 1)         dilated conv bias + conditioner conv bias (folded)
    w_c_ref,    # (2C, 1)         conditioner 1x1 conv weight (single input channel)
    w_out_ref,  # (2C, C)         output 1x1 conv weight (residual || skip rows)
    b_out_ref,  # (2C, 1)
    res_ref,    # (1, C, N_pad)   out: (x + residual) / sqrt(2)  (padded layout)
    skip_ref,   # (1, C, N_pad)   out: skip                      (padded layout)
    *, C, N_pad, W_pad, d,
):
    f32 = jnp.float32
    y_raw = y_ref[0]                                    # (C, N_ext)

    # residual-aligned x == center tap of the (pre-dproj) padded input
    off_c = d * W_pad + d
    x_res = y_raw[:, off_c:off_c + N_pad]               # (C, N_pad)

    # diffusion projection: Linear(512 -> C), added to interior pixels only
    dproj = jnp.dot(w_dp_ref[...], diff_ref[0],
                    preferred_element_type=f32) + b_dp_ref[...]          # (C, 1)
    y = y_raw + mask_ref[...] * dproj                                    # (C, N_ext)

    # dilated 3x3 conv: 9 shifted views concatenated on K -> one MXU matmul
    taps = [y[:, (ky * d * W_pad + kx * d):(ky * d * W_pad + kx * d) + N_pad]
            for ky in range(3) for kx in range(3)]
    tap_cat = jnp.concatenate(taps, axis=0)                              # (9C, N_pad)
    gf = jnp.dot(w_cat_ref[...], tap_cat, preferred_element_type=f32)    # (2C, N_pad)

    # conditioner 1x1 conv (single input channel) + folded biases
    gf = gf + w_c_ref[...] * cond_ref[0] + b_gf_ref[...]

    # gated activation
    z = jax.nn.sigmoid(gf[:C]) * jnp.tanh(gf[C:])                        # (C, N_pad)

    # output 1x1 conv -> residual || skip
    out = jnp.dot(w_out_ref[...], z, preferred_element_type=f32) + b_out_ref[...]

    inv_sqrt2 = 1.0 / math.sqrt(2.0)
    res_ref[0] = ((x_res + out[:C]) * inv_sqrt2).astype(res_ref.dtype)
    skip_ref[0] = out[C:].astype(skip_ref.dtype)


def residual_block_v2(x, diffusion_step, conditioner, params, dilation):
    """x: (B, C, H, W) NCHW; diffusion_step: (B, 512); conditioner: (B, 1, H, W)."""
    B, C, H, W = x.shape
    d = int(dilation)
    H_pad, W_pad = H + 2 * d, W + 2 * d
    N_pad = H_pad * W_pad
    off_max = 2 * d * W_pad + 2 * d          # largest tap offset
    N_ext = N_pad + off_max
    two_c = 2 * C
    f32 = jnp.float32

    # --- glue: layout transforms only (padding / flattening / weight repack) ---
    x = x.astype(f32)
    y_ext = jnp.pad(x, ((0, 0), (0, 0), (d, d), (d, d))).reshape(B, C, N_pad)
    y_ext = jnp.pad(y_ext, ((0, 0), (0, 0), (0, off_max)))               # (B, C, N_ext)

    cond = jnp.pad(conditioner.astype(f32),
                   ((0, 0), (0, 0), (0, 2 * d), (0, 2 * d))).reshape(B, 1, N_pad)
    diff3 = diffusion_step.astype(f32).reshape(B, 512, 1)

    mask2d = jnp.zeros((H_pad, W_pad), f32).at[d:d + H, d:d + W].set(1.0)
    mask = jnp.pad(mask2d.reshape(1, N_pad), ((0, 0), (0, off_max)))     # (1, N_ext)

    w_dp = params['dp_w'].astype(f32)                                    # (C, 512)
    b_dp = params['dp_b'].astype(f32).reshape(C, 1)
    w_cat = jnp.transpose(params['dilated_w'].astype(f32), (0, 2, 3, 1)).reshape(two_c, 9 * C)
    b_gf = (params['dilated_b'] + params['cond_b']).astype(f32).reshape(two_c, 1)
    w_c = params['cond_w'].astype(f32).reshape(two_c, 1)
    w_out = params['out_w'].astype(f32).reshape(two_c, C)
    b_out = params['out_b'].astype(f32).reshape(two_c, 1)

    kernel = functools.partial(_resblock_kernel, C=C, N_pad=N_pad, W_pad=W_pad, d=d)

    res_pad, skip_pad = pl.pallas_call(
        kernel,
        out_shape=(jax.ShapeDtypeStruct((B, C, N_pad), f32),
                   jax.ShapeDtypeStruct((B, C, N_pad), f32)),
        grid=(B,),
        in_specs=[
            pl.BlockSpec((1, C, N_ext), lambda b: (b, 0, 0)),     # y_ext
            pl.BlockSpec((1, 1, N_pad), lambda b: (b, 0, 0)),     # cond
            pl.BlockSpec((1, 512, 1), lambda b: (b, 0, 0)),       # diff
            pl.BlockSpec((1, N_ext), lambda b: (0, 0)),           # mask
            pl.BlockSpec((C, 512), lambda b: (0, 0)),             # w_dp
            pl.BlockSpec((C, 1), lambda b: (0, 0)),               # b_dp
            pl.BlockSpec((two_c, 9 * C), lambda b: (0, 0)),       # w_cat
            pl.BlockSpec((two_c, 1), lambda b: (0, 0)),           # b_gf
            pl.BlockSpec((two_c, 1), lambda b: (0, 0)),           # w_c
            pl.BlockSpec((two_c, C), lambda b: (0, 0)),           # w_out
            pl.BlockSpec((two_c, 1), lambda b: (0, 0)),           # b_out
        ],
        out_specs=(pl.BlockSpec((1, C, N_pad), lambda b: (b, 0, 0)),
                   pl.BlockSpec((1, C, N_pad), lambda b: (b, 0, 0))),
        compiler_params=pltpu.CompilerParams(
            dimension_semantics=("parallel",),
            vmem_limit_bytes=32 * 1024 * 1024),
    )(y_ext, cond, diff3, mask, w_dp, b_dp, w_cat, b_gf, w_c, w_out, b_out)

    # crop the padded output grid (results live in the top-left H x W corner)
    res = res_pad.reshape(B, C, H_pad, W_pad)[:, :, :H, :W]
    skip = skip_pad.reshape(B, C, H_pad, W_pad)[:, :, :H, :W]
    return res, skip


def init_params(key, C):
    """Deterministic synthetic init matching the module's parameter shapes."""
    two_c = 2 * C
    k = jax.random.split(key, 8)
    fan_dil = C * 9
    return {
        # Conv2d(C, 2C, 3, padding=d, dilation=d), kaiming_normal_
        'dilated_w': jax.random.normal(k[0], (two_c, C, 3, 3), jnp.float32)
                     * math.sqrt(2.0 / fan_dil),
        'dilated_b': jax.random.uniform(k[1], (two_c,), jnp.float32,
                                        -1.0 / math.sqrt(fan_dil), 1.0 / math.sqrt(fan_dil)),
        # Linear(512, C)
        'dp_w': jax.random.uniform(k[2], (C, 512), jnp.float32,
                                   -1.0 / math.sqrt(512), 1.0 / math.sqrt(512)),
        'dp_b': jax.random.uniform(k[3], (C,), jnp.float32,
                                   -1.0 / math.sqrt(512), 1.0 / math.sqrt(512)),
        # Conv2d(1, 2C, 1), kaiming_normal_
        'cond_w': jax.random.normal(k[4], (two_c, 1, 1, 1), jnp.float32) * math.sqrt(2.0),
        'cond_b': jax.random.uniform(k[5], (two_c,), jnp.float32, -1.0, 1.0),
        # Conv2d(C, 2C, 1), kaiming_normal_
        'out_w': jax.random.normal(k[6], (two_c, C, 1, 1), jnp.float32) * math.sqrt(2.0 / C),
        'out_b': jax.random.uniform(k[7], (two_c,), jnp.float32,
                                    -1.0 / math.sqrt(C), 1.0 / math.sqrt(C)),
    }


def reference(x, diffusion_step, conditioner, p, dilation):
    """Pure-JAX (XLA) reference reproducing the PyTorch forward semantics."""
    d = int(dilation)
    dn = ('NCHW', 'OIHW', 'NCHW')
    dproj = diffusion_step @ p['dp_w'].T + p['dp_b']                     # (B, C)
    y = x + dproj[:, :, None, None]
    y = lax.conv_general_dilated(y, p['dilated_w'], (1, 1), ((d, d), (d, d)),
                                 rhs_dilation=(d, d), dimension_numbers=dn)
    y = y + p['dilated_b'][None, :, None, None]
    c = lax.conv_general_dilated(conditioner, p['cond_w'], (1, 1), 'VALID',
                                 dimension_numbers=dn)
    y = y + c + p['cond_b'][None, :, None, None]
    gate, filt = jnp.split(y, 2, axis=1)
    y = jax.nn.sigmoid(gate) * jnp.tanh(filt)
    y = lax.conv_general_dilated(y, p['out_w'], (1, 1), 'VALID',
                                 dimension_numbers=dn)
    y = y + p['out_b'][None, :, None, None]
    residual, skip = jnp.split(y, 2, axis=1)
    return (x + residual) / math.sqrt(2.0), skip


if __name__ == "__main__":
    key = jax.random.PRNGKey(0)
    B, C, H, W = 2, 4, 16, 16          # batch, residual_channels, spatial
    dilation = 2
    ks = jax.random.split(key, 4)
    x = jax.random.normal(ks[0], (B, C, H, W), jnp.float32)
    diffusion_step = jax.random.normal(ks[1], (B, 512), jnp.float32)
    conditioner = jax.random.normal(ks[2], (B, 1, H, W), jnp.float32)
    params = init_params(ks[3], C)

    res, skip = residual_block_v2(x, diffusion_step, conditioner, params, dilation)
    jax.block_until_ready((res, skip))

    res_ref, skip_ref = reference(x, diffusion_step, conditioner, params, dilation)
    assert res.shape == (B, C, H, W) and skip.shape == (B, C, H, W)
    assert jnp.allclose(res, res_ref, atol=1e-4, rtol=1e-4), "residual mismatch"
    assert jnp.allclose(skip, skip_ref, atol=1e-4, rtol=1e-4), "skip mismatch"
    print("KERNEL_OK")
</pallas_src>

<mosaic_0001>
module attributes {stable_mosaic.version = 11 : i64} {
  func.func @_resblock_kernel(%arg0: i32, %arg1: memref<1x4x484xf32, #tpu.memory_space<vmem>>, %arg2: memref<1x1x400xf32, #tpu.memory_space<vmem>>, %arg3: memref<1x512x1xf32, #tpu.memory_space<vmem>>, %arg4: memref<1x484xf32, #tpu.memory_space<vmem>>, %arg5: memref<4x512xf32, #tpu.memory_space<vmem>>, %arg6: memref<4x1xf32, #tpu.memory_space<vmem>>, %arg7: memref<8x36xf32, #tpu.memory_space<vmem>>, %arg8: memref<8x1xf32, #tpu.memory_space<vmem>>, %arg9: memref<8x1xf32, #tpu.memory_space<vmem>>, %arg10: memref<8x4xf32, #tpu.memory_space<vmem>>, %arg11: memref<8x1xf32, #tpu.memory_space<vmem>>, %arg12: memref<1x4x400xf32, #tpu.memory_space<vmem>>, %arg13: memref<1x4x400xf32, #tpu.memory_space<vmem>>) attributes {dimension_semantics = [#tpu.dimension_semantics<parallel>], iteration_bounds = array<i64: 2>, scalar_prefetch = 0 : i64, scratch_operands = 0 : i64, tpu.core_type = #tpu.core_type<tc>, window_params = [{transform_indices = @transform_0, window_bounds = array<i64: 1, 4, 484>}, {transform_indices = @transform_1, window_bounds = array<i64: 1, 1, 400>}, {transform_indices = @transform_2, window_bounds = array<i64: 1, 512, 1>}, {pipeline_mode = #tpu.pipeline_mode<synchronous>, transform_indices = @transform_3, window_bounds = array<i64: 1, 484>}, {pipeline_mode = #tpu.pipeline_mode<synchronous>, transform_indices = @transform_4, window_bounds = array<i64: 4, 512>}, {pipeline_mode = #tpu.pipeline_mode<synchronous>, transform_indices = @transform_5, window_bounds = array<i64: 4, 1>}, {pipeline_mode = #tpu.pipeline_mode<synchronous>, transform_indices = @transform_6, window_bounds = array<i64: 8, 36>}, {pipeline_mode = #tpu.pipeline_mode<synchronous>, transform_indices = @transform_7, window_bounds = array<i64: 8, 1>}, {pipeline_mode = #tpu.pipeline_mode<synchronous>, transform_indices = @transform_8, window_bounds = array<i64: 8, 1>}, {pipeline_mode = #tpu.pipeline_mode<synchronous>, transform_indices = @transform_9, window_bounds = array<i64: 8, 4>}, {pipeline_mode = #tpu.pipeline_mode<synchronous>, transform_indices = @transform_10, window_bounds = array<i64: 8, 1>}, {transform_indices = @transform_11, window_bounds = array<i64: 1, 4, 400>}, {transform_indices = @transform_12, window_bounds = array<i64: 1, 4, 400>}]} {
    %c0 = arith.constant 0 : index
    %c0_0 = arith.constant 0 : index
    %c0_1 = arith.constant 0 : index
    %0 = vector.load %arg1[%c0, %c0_0, %c0_1] : memref<1x4x484xf32, #tpu.memory_space<vmem>>, vector<1x4x484xf32>
    %1 = vector.shape_cast %0 : vector<1x4x484xf32> to vector<4x484xf32>
    %2 = vector.extract_strided_slice %1 {offsets = [0, 42], sizes = [4, 400], strides = [1, 1]} : vector<4x484xf32> to vector<4x400xf32>
    %c0_2 = arith.constant 0 : index
    %c0_3 = arith.constant 0 : index
    %3 = vector.load %arg5[%c0_2, %c0_3] : memref<4x512xf32, #tpu.memory_space<vmem>>, vector<4x512xf32>
    %c0_4 = arith.constant 0 : index
    %c0_5 = arith.constant 0 : index
    %c0_6 = arith.constant 0 : index
    %4 = vector.load %arg3[%c0_4, %c0_5, %c0_6] : memref<1x512x1xf32, #tpu.memory_space<vmem>>, vector<1x512x1xf32>
    %5 = vector.shape_cast %4 : vector<1x512x1xf32> to vector<512x1xf32>
    %cst = arith.constant dense<0.000000e+00> : vector<4x1xf32>
    %6 = tpu.matmul %3, %5, %cst {dimension_numbers = #tpu.dot_dimension_numbers<[1], [0], [0], [1], [0, 0, 1, 1], [], []>} : vector<4x512xf32>, vector<512x1xf32>, vector<4x1xf32> -> vector<4x1xf32>
    %c0_7 = arith.constant 0 : index
    %c0_8 = arith.constant 0 : index
    %7 = vector.load %arg6[%c0_7, %c0_8] : memref<4x1xf32, #tpu.memory_space<vmem>>, vector<4x1xf32>
    %8 = arith.addf %6, %7 : vector<4x1xf32>
    %c0_9 = arith.constant 0 : index
    %c0_10 = arith.constant 0 : index
    %9 = vector.load %arg4[%c0_9, %c0_10] : memref<1x484xf32, #tpu.memory_space<vmem>>, vector<1x484xf32>
    %10 = vector.broadcast %9 : vector<1x484xf32> to vector<4x484xf32>
    %11 = vector.broadcast %8 : vector<4x1xf32> to vector<4x484xf32>
    %12 = arith.mulf %10, %11 : vector<4x484xf32>
    %13 = arith.addf %1, %12 : vector<4x484xf32>
    %14 = vector.extract_strided_slice %13 {offsets = [0, 0], sizes = [4, 400], strides = [1, 1]} : vector<4x484xf32> to vector<4x400xf32>
    %15 = vector.extract_strided_slice %13 {offsets = [0, 2], sizes = [4, 400], strides = [1, 1]} : vector<4x484xf32> to vector<4x400xf32>
    %16 = vector.extract_strided_slice %13 {offsets = [0, 4], sizes = [4, 400], strides = [1, 1]} : vector<4x484xf32> to vector<4x400xf32>
    %17 = vector.extract_strided_slice %13 {offsets = [0, 40], sizes = [4, 400], strides = [1, 1]} : vector<4x484xf32> to vector<4x400xf32>
    %18 = vector.extract_strided_slice %13 {offsets = [0, 42], sizes = [4, 400], strides = [1, 1]} : vector<4x484xf32> to vector<4x400xf32>
    %19 = vector.extract_strided_slice %13 {offsets = [0, 44], sizes = [4, 400], strides = [1, 1]} : vector<4x484xf32> to vector<4x400xf32>
    %20 = vector.extract_strided_slice %13 {offsets = [0, 80], sizes = [4, 400], strides = [1, 1]} : vector<4x484xf32> to vector<4x400xf32>
    %21 = vector.extract_strided_slice %13 {offsets = [0, 82], sizes = [4, 400], strides = [1, 1]} : vector<4x484xf32> to vector<4x400xf32>
    %22 = vector.extract_strided_slice %13 {offsets = [0, 84], sizes = [4, 400], strides = [1, 1]} : vector<4x484xf32> to vector<4x400xf32>
    %23 = tpu.concatenate %14, %15, %16, %17, %18, %19, %20, %21, %22 in 0 : vector<4x400xf32>, vector<4x400xf32>, vector<4x400xf32>, vector<4x400xf32>, vector<4x400xf32>, vector<4x400xf32>, vector<4x400xf32>, vector<4x400xf32>, vector<4x400xf32> -> vector<36x400xf32>
    %c0_11 = arith.constant 0 : index
    %c0_12 = arith.constant 0 : index
    %24 = vector.load %arg7[%c0_11, %c0_12] : memref<8x36xf32, #tpu.memory_space<vmem>>, vector<8x36xf32>
    %cst_13 = arith.constant dense<0.000000e+00> : vector<8x400xf32>
    %25 = tpu.matmul %24, %23, %cst_13 {dimension_numbers = #tpu.dot_dimension_numbers<[1], [0], [0], [1], [0, 0, 1, 1], [], []>} : vector<8x36xf32>, vector<36x400xf32>, vector<8x400xf32> -> vector<8x400xf32>
    %c0_14 = arith.constant 0 : index
    %c0_15 = arith.constant 0 : index
    %26 = vector.load %arg9[%c0_14, %c0_15] : memref<8x1xf32, #tpu.memory_space<vmem>>, vector<8x1xf32>
    %c0_16 = arith.constant 0 : index
    %c0_17 = arith.constant 0 : index
    %c0_18 = arith.constant 0 : index
    %27 = vector.load %arg2[%c0_16, %c0_17, %c0_18] : memref<1x1x400xf32, #tpu.memory_space<vmem>>, vector<1x1x400xf32>
    %28 = vector.shape_cast %27 : vector<1x1x400xf32> to vector<1x400xf32>
    %29 = vector.broadcast %26 : vector<8x1xf32> to vector<8x400xf32>
    %30 = vector.broadcast %28 : vector<1x400xf32> to vector<8x400xf32>
    %31 = arith.mulf %29, %30 : vector<8x400xf32>
    %32 = arith.addf %25, %31 : vector<8x400xf32>
    %c0_19 = arith.constant 0 : index
    %c0_20 = arith.constant 0 : index
    %33 = vector.load %arg8[%c0_19, %c0_20] : memref<8x1xf32, #tpu.memory_space<vmem>>, vector<8x1xf32>
    %34 = vector.broadcast %33 : vector<8x1xf32> to vector<8x400xf32>
    %35 = arith.addf %32, %34 : vector<8x400xf32>
    %36 = vector.extract_strided_slice %35 {offsets = [0, 0], sizes = [4, 400], strides = [1, 1]} : vector<8x400xf32> to vector<4x400xf32>
    %37 = arith.negf %36 : vector<4x400xf32>
    %38 = math.exp %37 : vector<4x400xf32>
    %cst_21 = arith.constant 1.000000e+00 : f32
    %39 = vector.broadcast %cst_21 : f32 to vector<4x400xf32>
    %40 = arith.addf %39, %38 : vector<4x400xf32>
    %41 = arith.divf %39, %40 : vector<4x400xf32>
    %42 = vector.extract_strided_slice %35 {offsets = [4, 0], sizes = [4, 400], strides = [1, 1]} : vector<8x400xf32> to vector<4x400xf32>
    %43 = math.tanh %42 : vector<4x400xf32>
    %44 = arith.mulf %41, %43 : vector<4x400xf32>
    %c0_22 = arith.constant 0 : index
    %c0_23 = arith.constant 0 : index
    %45 = vector.load %arg10[%c0_22, %c0_23] : memref<8x4xf32, #tpu.memory_space<vmem>>, vector<8x4xf32>
    %cst_24 = arith.constant dense<0.000000e+00> : vector<8x400xf32>
    %46 = tpu.matmul %45, %44, %cst_24 {dimension_numbers = #tpu.dot_dimension_numbers<[1], [0], [0], [1], [0, 0, 1, 1], [], []>} : vector<8x4xf32>, vector<4x400xf32>, vector<8x400xf32> -> vector<8x400xf32>
    %c0_25 = arith.constant 0 : index
    %c0_26 = arith.constant 0 : index
    %47 = vector.load %arg11[%c0_25, %c0_26] : memref<8x1xf32, #tpu.memory_space<vmem>>, vector<8x1xf32>
    %48 = vector.broadcast %47 : vector<8x1xf32> to vector<8x400xf32>
    %49 = arith.addf %46, %48 : vector<8x400xf32>
    %50 = vector.extract_strided_slice %49 {offsets = [0, 0], sizes = [4, 400], strides = [1, 1]} : vector<8x400xf32> to vector<4x400xf32>
    %51 = arith.addf %2, %50 : vector<4x400xf32>
    %cst_27 = arith.constant 0.707106769 : f32
    %52 = vector.broadcast %cst_27 : f32 to vector<4x400xf32>
    %53 = arith.mulf %51, %52 : vector<4x400xf32>
    %c0_28 = arith.constant 0 : index
    %c0_29 = arith.constant 0 : index
    %c0_30 = arith.constant 0 : index
    %54 = vector.load %arg12[%c0_28, %c0_29, %c0_30] : memref<1x4x400xf32, #tpu.memory_space<vmem>>, vector<1x4x400xf32>
    %55 = vector.shape_cast %54 : vector<1x4x400xf32> to vector<4x400xf32>
    %56 = vector.shape_cast %53 : vector<4x400xf32> to vector<1x4x400xf32>
    tpu.vector_store %arg12[%c0_28, %c0_29, %c0_30], %56 {strides = array<i32>} : memref<1x4x400xf32, #tpu.memory_space<vmem>>, vector<1x4x400xf32>,
    %57 = vector.extract_strided_slice %49 {offsets = [4, 0], sizes = [4, 400], strides = [1, 1]} : vector<8x400xf32> to vector<4x400xf32>
    %c0_31 = arith.constant 0 : index
    %c0_32 = arith.constant 0 : index
    %c0_33 = arith.constant 0 : index
    %58 = vector.load %arg13[%c0_31, %c0_32, %c0_33] : memref<1x4x400xf32, #tpu.memory_space<vmem>>, vector<1x4x400xf32>
    %59 = vector.shape_cast %58 : vector<1x4x400xf32> to vector<4x400xf32>
    %60 = vector.shape_cast %57 : vector<4x400xf32> to vector<1x4x400xf32>
    tpu.vector_store %arg13[%c0_31, %c0_32, %c0_33], %60 {strides = array<i32>} : memref<1x4x400xf32, #tpu.memory_space<vmem>>, vector<1x4x400xf32>,
    return
  }
  func.func @transform_0(%arg0: i32) -> (i32, i32, i32) {
    %c0_i32 = arith.constant 0 : i32
    %c0_i32_0 = arith.constant 0 : i32
    %c0_i32_1 = arith.constant 0 : i32
    return %arg0, %c0_i32, %c0_i32_0 : i32, i32, i32
  }
  func.func @transform_1(%arg0: i32) -> (i32, i32, i32) {
    %c0_i32 = arith.constant 0 : i32
    %c0_i32_0 = arith.constant 0 : i32
    %c0_i32_1 = arith.constant 0 : i32
    return %arg0, %c0_i32, %c0_i32_0 : i32, i32, i32
  }
  func.func @transform_2(%arg0: i32) -> (i32, i32, i32) {
    %c0_i32 = arith.constant 0 : i32
    %c0_i32_0 = arith.constant 0 : i32
    %c0_i32_1 = arith.constant 0 : i32
    return %arg0, %c0_i32, %c0_i32_0 : i32, i32, i32
  }
  func.func @transform_3(%arg0: i32) -> (i32, i32) {
    %c0_i32 = arith.constant 0 : i32
    %c0_i32_0 = arith.constant 0 : i32
    %c0_i32_1 = arith.constant 0 : i32
    return %c0_i32, %c0_i32_0 : i32, i32
  }
  func.func @transform_4(%arg0: i32) -> (i32, i32) {
    %c0_i32 = arith.constant 0 : i32
    %c0_i32_0 = arith.constant 0 : i32
    %c0_i32_1 = arith.constant 0 : i32
    return %c0_i32, %c0_i32_0 : i32, i32
  }
  func.func @transform_5(%arg0: i32) -> (i32, i32) {
    %c0_i32 = arith.constant 0 : i32
    %c0_i32_0 = arith.constant 0 : i32
    %c0_i32_1 = arith.constant 0 : i32
    return %c0_i32, %c0_i32_0 : i32, i32
  }
  func.func @transform_6(%arg0: i32) -> (i32, i32) {
    %c0_i32 = arith.constant 0 : i32
    %c0_i32_0 = arith.constant 0 : i32
    %c0_i32_1 = arith.constant 0 : i32
    return %c0_i32, %c0_i32_0 : i32, i32
  }
  func.func @transform_7(%arg0: i32) -> (i32, i32) {
    %c0_i32 = arith.constant 0 : i32
    %c0_i32_0 = arith.constant 0 : i32
    %c0_i32_1 = arith.constant 0 : i32
    return %c0_i32, %c0_i32_0 : i32, i32
  }
  func.func @transform_8(%arg0: i32) -> (i32, i32) {
    %c0_i32 = arith.constant 0 : i32
    %c0_i32_0 = arith.constant 0 : i32
    %c0_i32_1 = arith.constant 0 : i32
    return %c0_i32, %c0_i32_0 : i32, i32
  }
  func.func @transform_9(%arg0: i32) -> (i32, i32) {
    %c0_i32 = arith.constant 0 : i32
    %c0_i32_0 = arith.constant 0 : i32
    %c0_i32_1 = arith.constant 0 : i32
    return %c0_i32, %c0_i32_0 : i32, i32
  }
  func.func @transform_10(%arg0: i32) -> (i32, i32) {
    %c0_i32 = arith.constant 0 : i32
    %c0_i32_0 = arith.constant 0 : i32
    %c0_i32_1 = arith.constant 0 : i32
    return %c0_i32, %c0_i32_0 : i32, i32
  }
  func.func @transform_11(%arg0: i32) -> (i32, i32, i32) {
    %c0_i32 = arith.constant 0 : i32
    %c0_i32_0 = arith.constant 0 : i32
    %c0_i32_1 = arith.constant 0 : i32
    return %arg0, %c0_i32, %c0_i32_0 : i32, i32, i32
  }
  func.func @transform_12(%arg0: i32) -> (i32, i32, i32) {
    %c0_i32 = arith.constant 0 : i32
    %c0_i32_0 = arith.constant 0 : i32
    %c0_i32_1 = arith.constant 0 : i32
    return %arg0, %c0_i32, %c0_i32_0 : i32, i32, i32
  }
}

</mosaic_0001>

<llo_original>
// kernel: tpu_custom_call.1
$region0: #{tpu_custom_call.1}
  #allocation0 [shape = 'u32[]', space=smem, size = 0x4, offset = 0x4, fixed_abs, tag = 'smem constant byte address 0x4 - core index']
  #allocation1 [shape = 'u32[144,128]{1,0:T(1,128)}', space=vmem, size = 0x12000, scoped, tag = 'internal scratch']
  %s0 = inlined_call_operand.vmem [shape: f32[2,4,484], index: 0, kind: input, shape index: {}]
  %s1 = inlined_call_operand.vmem [shape: f32[2,1,400], index: 1, kind: input, shape index: {}]
  %s2 = inlined_call_operand.vmem [shape: f32[2,512,1], index: 2, kind: input, shape index: {}]
  %s3 = inlined_call_operand.vmem [shape: f32[1,484], index: 3, kind: input, shape index: {}]
  %s4 = inlined_call_operand.vmem [shape: f32[4,512], index: 4, kind: input, shape index: {}]
  %s5 = inlined_call_operand.vmem [shape: f32[4,1], index: 5, kind: input, shape index: {}]
  %s6 = inlined_call_operand.vmem [shape: f32[8,36], index: 6, kind: input, shape index: {}]
  %s7 = inlined_call_operand.vmem [shape: f32[8,1], index: 7, kind: input, shape index: {}]
  %s8 = inlined_call_operand.vmem [shape: f32[8,1], index: 8, kind: input, shape index: {}]
  %s9 = inlined_call_operand.vmem [shape: f32[8,4], index: 9, kind: input, shape index: {}]
  %s10 = inlined_call_operand.vmem [shape: f32[8,1], index: 10, kind: input, shape index: {}]
  %s11 = inlined_call_operand.hbm [shape: f32[2,4,400], index: 11, kind: output, shape index: {0}]
  %s12 = inlined_call_operand.hbm [shape: f32[2,4,400], index: 12, kind: output, shape index: {1}]
  %13 = xla_tuple %s11, %s12
  %s14 = sld [smem:[#allocation0]]
  $region85: #{tpu_custom_call.1} parent=0
    _
  %s16 = ssub.s32 1, %s14
  %s17 = scalar_select 0, %s16, %s14
  $region1: #{tpu_custom_call.1} parent=0
    #allocation2 [shape = 'u8[16384]{0}', space=vmem, size = 0x4000, scoped, tag = 'output window, operand 0']
    #allocation3 [shape = 's32[2]{0}', space=sflag, size = 0x8, scoped, tag = 'scoped memory for tpu_custom_call.1']
    #allocation4 [shape = 'u8[16384]{0}', space=vmem, size = 0x4000, scoped, tag = 'output window, operand 1']
    #allocation5 [shape = 's32[2]{0}', space=sflag, size = 0x8, scoped, tag = 'scoped memory for tpu_custom_call.1']
    %18 = vsyncpa [#allocation3], 0
    %s19 = scalar_lea.sflag [#allocation3], 1
    %20 = vsyncpa %s19, 0
    %21 = vsyncpa [#allocation5], 0
    %s22 = scalar_lea.sflag [#allocation5], 1
    %23 = vsyncpa %s22, 0
    loop: start=0, step=1, limit=4
    $region2: #{tpu_custom_call.1} parent=1 // loop_pre_header
      _
    $region3: #{tpu_custom_call.1} parent=1 // loop_header
      %s25 = sphi 0, %s29
      %p26 = scmp.ge.s32.totalorder %s25, 4
      %s35 = sphi 0, %s37
      %s38 = sphi 0, %s35
      %s39 = sphi 0, %s38
      %s55 = sphi 0, %s39
      %s61 = sphi 0, %s63
      %s64 = sphi 0, %s61
      %s65 = sphi 0, %s64
      %s81 = sphi 0, %s65
      %s87 = sphi 0, %s89
      %s90 = sphi 0, %s87
      %s91 = sphi 0, %s90
      %s107 = sphi 0, %s91
      %s111 = sphi 0, %s111
      %s113 = sphi 0, %s111
      %s114 = sphi 0, %s113
      %s128 = sphi 0, %s114
      %s132 = sphi 0, %s132
      %s134 = sphi 0, %s132
      %s135 = sphi 0, %s134
      %s149 = sphi 0, %s135
      %s153 = sphi 0, %s153
      %s155 = sphi 0, %s153
      %s156 = sphi 0, %s155
      %s170 = sphi 0, %s156
      %s174 = sphi 0, %s174
      %s176 = sphi 0, %s174
      %s177 = sphi 0, %s176
      %s191 = sphi 0, %s177
      %s195 = sphi 0, %s195
      %s197 = sphi 0, %s195
      %s198 = sphi 0, %s197
      %s212 = sphi 0, %s198
      %s216 = sphi 0, %s216
      %s218 = sphi 0, %s216
      %s219 = sphi 0, %s218
      %s233 = sphi 0, %s219
      %s237 = sphi 0, %s237
      %s239 = sphi 0, %s237
      %s240 = sphi 0, %s239
      %s254 = sphi 0, %s240
      %s258 = sphi 0, %s258
      %s260 = sphi 0, %s258
      %s261 = sphi 0, %s260
      %s275 = sphi 0, %s261
      %s281 = sphi 0, %s283
      %s284 = sphi 0, %s281
      %s285 = sphi 0, %s284
      %s301 = sphi 0, %s285
      %s307 = sphi 0, %s309
      %s310 = sphi 0, %s307
      %s311 = sphi 0, %s310
      %s327 = sphi 0, %s311
    $region4: #{tpu_custom_call.1} parent=1 // loop_header_branch
      %28 = sbr.rel (%p26) target = $region8
    $region5: #{tpu_custom_call.1} parent=1 // loop_body
      %s30 = ssub.s32 %s25, 1
      %s31 = ssub.s32 %s25, 2
      %s32 = sadd.s32 %s25, 1
      %s33 = ssub.s32 %s25, %s32
      %p34 = scmp.eq.s32.totalorder %s33, 0
      %s36 = sadd.s32 %s35, 1
      %s37 = scalar_select %p34, %s35, %s36
      %p40 = pneg %p34
      %p41 = scmp.eq.s32.totalorder %s25, 1
      %p42 = por %p40, %p41
      %p43 = scmp.ne.s32.totalorder %s35, %s38
      %p44 = scmp.eq.s32.totalorder %s25, 0
      %p45 = por %p43, %p44
      %p46 = scmp.ne.s32.totalorder %s35, %s38
      %p47 = scmp.eq.s32.totalorder %s30, 1
      %p48 = por %p46, %p47
      %p49 = scmp.ne.s32.totalorder %s38, %s39
      %p50 = scmp.eq.s32.totalorder %s30, 0
      %p51 = por %p49, %p50
      %p52 = scmp.ne.s32.totalorder %s38, %s39
      %p53 = scmp.eq.s32.totalorder %s31, 1
      %p54 = por %p52, %p53
      %p56 = scmp.ne.s32.totalorder %s39, %s55
      %p57 = scmp.eq.s32.totalorder %s31, 0
      %p58 = por %p56, %p57
      %s59 = ssub.s32 %s25, %s32
      %p60 = scmp.eq.s32.totalorder %s59, 0
      %s62 = sadd.s32 %s61, 1
      %s63 = scalar_select %p60, %s61, %s62
      %p66 = pneg %p60
      %p67 = scmp.eq.s32.totalorder %s25, 1
      %p68 = por %p66, %p67
      %p69 = scmp.ne.s32.totalorder %s61, %s64
      %p70 = scmp.eq.s32.totalorder %s25, 0
      %p71 = por %p69, %p70
      %p72 = scmp.ne.s32.totalorder %s61, %s64
      %p73 = scmp.eq.s32.totalorder %s30, 1
      %p74 = por %p72, %p73
      %p75 = scmp.ne.s32.totalorder %s64, %s65
      %p76 = scmp.eq.s32.totalorder %s30, 0
      %p77 = por %p75, %p76
      %p78 = scmp.ne.s32.totalorder %s64, %s65
      %p79 = scmp.eq.s32.totalorder %s31, 1
      %p80 = por %p78, %p79
      %p82 = scmp.ne.s32.totalorder %s65, %s81
      %p83 = scmp.eq.s32.totalorder %s31, 0
      %p84 = por %p82, %p83
      %s85 = ssub.s32 %s25, %s32
      %p86 = scmp.eq.s32.totalorder %s85, 0
      %s88 = sadd.s32 %s87, 1
      %s89 = scalar_select %p86, %s87, %s88
      %p92 = pneg %p86
      %p93 = scmp.eq.s32.totalorder %s25, 1
      %p94 = por %p92, %p93
      %p95 = scmp.ne.s32.totalorder %s87, %s90
      %p96 = scmp.eq.s32.totalorder %s25, 0
      %p97 = por %p95, %p96
      %p98 = scmp.ne.s32.totalorder %s87, %s90
      %p99 = scmp.eq.s32.totalorder %s30, 1
      %p100 = por %p98, %p99
      %p101 = scmp.ne.s32.totalorder %s90, %s91
      %p102 = scmp.eq.s32.totalorder %s30, 0
      %p103 = por %p101, %p102
      %p104 = scmp.ne.s32.totalorder %s90, %s91
      %p105 = scmp.eq.s32.totalorder %s31, 1
      %p106 = por %p104, %p105
      %p108 = scmp.ne.s32.totalorder %s91, %s107
      %p109 = scmp.eq.s32.totalorder %s31, 0
      %p110 = por %p108, %p109
      %s112 = sadd.s32 %s111, 1
      %p115 = scmp.eq.s32.totalorder %s25, 1
      %p116 = scmp.ne.s32.totalorder %s111, %s113
      %p117 = scmp.eq.s32.totalorder %s25, 0
      %p118 = por %p116, %p117
      %p119 = scmp.ne.s32.totalorder %s111, %s113
      %p120 = scmp.eq.s32.totalorder %s30, 1
      %p121 = por %p119, %p120
      %p122 = scmp.ne.s32.totalorder %s113, %s114
      %p123 = scmp.eq.s32.totalorder %s30, 0
      %p124 = por %p122, %p123
      %p125 = scmp.ne.s32.totalorder %s113, %s114
      %p126 = scmp.eq.s32.totalorder %s31, 1
      %p127 = por %p125, %p126
      %p129 = scmp.ne.s32.totalorder %s114, %s128
      %p130 = scmp.eq.s32.totalorder %s31, 0
      %p131 = por %p129, %p130
      %s133 = sadd.s32 %s132, 1
      %p136 = scmp.eq.s32.totalorder %s25, 1
      %p137 = scmp.ne.s32.totalorder %s132, %s134
      %p138 = scmp.eq.s32.totalorder %s25, 0
      %p139 = por %p137, %p138
      %p140 = scmp.ne.s32.totalorder %s132, %s134
      %p141 = scmp.eq.s32.totalorder %s30, 1
      %p142 = por %p140, %p141
      %p143 = scmp.ne.s32.totalorder %s134, %s135
      %p144 = scmp.eq.s32.totalorder %s30, 0
      %p145 = por %p143, %p144
      %p146 = scmp.ne.s32.totalorder %s134, %s135
      %p147 = scmp.eq.s32.totalorder %s31, 1
      %p148 = por %p146, %p147
      %p150 = scmp.ne.s32.totalorder %s135, %s149
      %p151 = scmp.eq.s32.totalorder %s31, 0
      %p152 = por %p150, %p151
      %s154 = sadd.s32 %s153, 1
      %p157 = scmp.eq.s32.totalorder %s25, 1
      %p158 = scmp.ne.s32.totalorder %s153, %s155
      %p159 = scmp.eq.s32.totalorder %s25, 0
      %p160 = por %p158, %p159
      %p161 = scmp.ne.s32.totalorder %s153, %s155
      %p162 = scmp.eq.s32.totalorder %s30, 1
      %p163 = por %p161, %p162
      %p164 = scmp.ne.s32.totalorder %s155, %s156
      %p165 = scmp.eq.s32.totalorder %s30, 0
      %p166 = por %p164, %p165
      %p167 = scmp.ne.s32.totalorder %s155, %s156
      %p168 = scmp.eq.s32.totalorder %s31, 1
      %p169 = por %p167, %p168
      %p171 = scmp.ne.s32.totalorder %s156, %s170
      %p172 = scmp.eq.s32.totalorder %s31, 0
      %p173 = por %p171, %p172
      %s175 = sadd.s32 %s174, 1
      %p178 = scmp.eq.s32.totalorder %s25, 1
      %p179 = scmp.ne.s32.totalorder %s174, %s176
      %p180 = scmp.eq.s32.totalorder %s25, 0
      %p181 = por %p179, %p180
      %p182 = scmp.ne.s32.totalorder %s174, %s176
      %p183 = scmp.eq.s32.totalorder %s30, 1
      %p184 = por %p182, %p183
      %p185 = scmp.ne.s32.totalorder %s176, %s177
      %p186 = scmp.eq.s32.totalorder %s30, 0
      %p187 = por %p185, %p186
      %p188 = scmp.ne.s32.totalorder %s176, %s177
      %p189 = scmp.eq.s32.totalorder %s31, 1
      %p190 = por %p188, %p189
      %p192 = scmp.ne.s32.totalorder %s177, %s191
      %p193 = scmp.eq.s32.totalorder %s31, 0
      %p194 = por %p192, %p193
      %s196 = sadd.s32 %s195, 1
      %p199 = scmp.eq.s32.totalorder %s25, 1
      %p200 = scmp.ne.s32.totalorder %s195, %s197
      %p201 = scmp.eq.s32.totalorder %s25, 0
      %p202 = por %p200, %p201
      %p203 = scmp.ne.s32.totalorder %s195, %s197
      %p204 = scmp.eq.s32.totalorder %s30, 1
      %p205 = por %p203, %p204
      %p206 = scmp.ne.s32.totalorder %s197, %s198
      %p207 = scmp.eq.s32.totalorder %s30, 0
      %p208 = por %p206, %p207
      %p209 = scmp.ne.s32.totalorder %s197, %s198
      %p210 = scmp.eq.s32.totalorder %s31, 1
      %p211 = por %p209, %p210
      %p213 = scmp.ne.s32.totalorder %s198, %s212
      %p214 = scmp.eq.s32.totalorder %s31, 0
      %p215 = por %p213, %p214
      %s217 = sadd.s32 %s216, 1
      %p220 = scmp.eq.s32.totalorder %s25, 1
      %p221 = scmp.ne.s32.totalorder %s216, %s218
      %p222 = scmp.eq.s32.totalorder %s25, 0
      %p223 = por %p221, %p222
      %p224 = scmp.ne.s32.totalorder %s216, %s218
      %p225 = scmp.eq.s32.totalorder %s30, 1
      %p226 = por %p224, %p225
      %p227 = scmp.ne.s32.totalorder %s218, %s219
      %p228 = scmp.eq.s32.totalorder %s30, 0
      %p229 = por %p227, %p228
      %p230 = scmp.ne.s32.totalorder %s218, %s219
      %p231 = scmp.eq.s32.totalorder %s31, 1
      %p232 = por %p230, %p231
      %p234 = scmp.ne.s32.totalorder %s219, %s233
      %p235 = scmp.eq.s32.totalorder %s31, 0
      %p236 = por %p234, %p235
      %s238 = sadd.s32 %s237, 1
      %p241 = scmp.eq.s32.totalorder %s25, 1
      %p242 = scmp.ne.s32.totalorder %s237, %s239
      %p243 = scmp.eq.s32.totalorder %s25, 0
      %p244 = por %p242, %p243
      %p245 = scmp.ne.s32.totalorder %s237, %s239
      %p246 = scmp.eq.s32.totalorder %s30, 1
      %p247 = por %p245, %p246
      %p248 = scmp.ne.s32.totalorder %s239, %s240
      %p249 = scmp.eq.s32.totalorder %s30, 0
      %p250 = por %p248, %p249
      %p251 = scmp.ne.s32.totalorder %s239, %s240
      %p252 = scmp.eq.s32.totalorder %s31, 1
      %p253 = por %p251, %p252
      %p255 = scmp.ne.s32.totalorder %s240, %s254
      %p256 = scmp.eq.s32.totalorder %s31, 0
      %p257 = por %p255, %p256
      %s259 = sadd.s32 %s258, 1
      %p262 = scmp.eq.s32.totalorder %s25, 1
      %p263 = scmp.ne.s32.totalorder %s258, %s260
      %p264 = scmp.eq.s32.totalorder %s25, 0
      %p265 = por %p263, %p264
      %p266 = scmp.ne.s32.totalorder %s258, %s260
      %p267 = scmp.eq.s32.totalorder %s30, 1
      %p268 = por %p266, %p267
      %p269 = scmp.ne.s32.totalorder %s260, %s261
      %p270 = scmp.eq.s32.totalorder %s30, 0
      %p271 = por %p269, %p270
      %p272 = scmp.ne.s32.totalorder %s260, %s261
      %p273 = scmp.eq.s32.totalorder %s31, 1
      %p274 = por %p272, %p273
      %p276 = scmp.ne.s32.totalorder %s261, %s275
      %p277 = scmp.eq.s32.totalorder %s31, 0
      %p278 = por %p276, %p277
      %s279 = ssub.s32 %s25, %s32
      %p280 = scmp.eq.s32.totalorder %s279, 0
      %s282 = sadd.s32 %s281, 1
      %s283 = scalar_select %p280, %s281, %s282
      %p286 = pneg %p280
      %p287 = scmp.eq.s32.totalorder %s25, 1
      %p288 = por %p286, %p287
      %p289 = scmp.ne.s32.totalorder %s281, %s284
      %p290 = scmp.eq.s32.totalorder %s25, 0
      %p291 = por %p289, %p290
      %p292 = scmp.ne.s32.totalorder %s281, %s284
      %p293 = scmp.eq.s32.totalorder %s30, 1
      %p294 = por %p292, %p293
      %p295 = scmp.ne.s32.totalorder %s284, %s285
      %p296 = scmp.eq.s32.totalorder %s30, 0
      %p297 = por %p295, %p296
      %p298 = scmp.ne.s32.totalorder %s284, %s285
      %p299 = scmp.eq.s32.totalorder %s31, 1
      %p300 = por %p298, %p299
      %p302 = scmp.ne.s32.totalorder %s285, %s301
      %p303 = scmp.eq.s32.totalorder %s31, 0
      %p304 = por %p302, %p303
      %s305 = ssub.s32 %s25, %s32
      %p306 = scmp.eq.s32.totalorder %s305, 0
      %s308 = sadd.s32 %s307, 1
      %s309 = scalar_select %p306, %s307, %s308
      %p312 = pneg %p306
      %p313 = scmp.eq.s32.totalorder %s25, 1
      %p314 = por %p312, %p313
      %p315 = scmp.ne.s32.totalorder %s307, %s310
      %p316 = scmp.eq.s32.totalorder %s25, 0
      %p317 = por %p315, %p316
      %p318 = scmp.ne.s32.totalorder %s307, %s310
      %p319 = scmp.eq.s32.totalorder %s30, 1
      %p320 = por %p318, %p319
      %p321 = scmp.ne.s32.totalorder %s310, %s311
      %p322 = scmp.eq.s32.totalorder %s30, 0
      %p323 = por %p321, %p322
      %p324 = scmp.ne.s32.totalorder %s310, %s311
      %p325 = scmp.eq.s32.totalorder %s31, 1
      %p326 = por %p324, %p325
      %p328 = scmp.ne.s32.totalorder %s311, %s327
      %p329 = scmp.eq.s32.totalorder %s31, 0
      %p330 = por %p328, %p329
      %p331 = scmp.le.s32.totalorder 1, %s25
      %p332 = scmp.lt.s32.totalorder %s25, 3
      %p333 = pnand %p331, %p332
      %p334 = pneg %p333
      // Predicated region
      $region9: #{tpu_custom_call.1} parent=5 // pred_check
        _
      $region10: #{tpu_custom_call.1} parent=5 // pred_check_branch
        %336 = sbr.rel (%p333) target = $region12
      $region11: #{tpu_custom_call.1} parent=5 // pred_region
        %s337 = ssub.s32 %s25, 1
        // Predicated region
        $region13: #{tpu_custom_call.1} parent=11 // pred_check
          %p338 = pneg %p124
        $region14: #{tpu_custom_call.1} parent=11 // pred_check_branch
          %340 = sbr.rel (%p338) target = $region16
        $region15: #{tpu_custom_call.1} parent=11 // pred_region
          _
        $region16: #{tpu_custom_call.1} parent=11 // pred_fallthru
          _
        // Predicated region
        $region17: #{tpu_custom_call.1} parent=11 // pred_check
          %p341 = pneg %p145
        $region18: #{tpu_custom_call.1} parent=11 // pred_check_branch
          %343 = sbr.rel (%p341) target = $region20
        $region19: #{tpu_custom_call.1} parent=11 // pred_region
          _
        $region20: #{tpu_custom_call.1} parent=11 // pred_fallthru
          _
        // Predicated region
        $region21: #{tpu_custom_call.1} parent=11 // pred_check
          %p344 = pneg %p166
        $region22: #{tpu_custom_call.1} parent=11 // pred_check_branch
          %346 = sbr.rel (%p344) target = $region24
        $region23: #{tpu_custom_call.1} parent=11 // pred_region
          _
        $region24: #{tpu_custom_call.1} parent=11 // pred_fallthru
          _
        // Predicated region
        $region25: #{tpu_custom_call.1} parent=11 // pred_check
          %p347 = pneg %p187
        $region26: #{tpu_custom_call.1} parent=11 // pred_check_branch
          %349 = sbr.rel (%p347) target = $region28
        $region27: #{tpu_custom_call.1} parent=11 // pred_region
          _
        $region28: #{tpu_custom_call.1} parent=11 // pred_fallthru
          _
        // Predicated region
        $region29: #{tpu_custom_call.1} parent=11 // pred_check
          %p350 = pneg %p208
        $region30: #{tpu_custom_call.1} parent=11 // pred_check_branch
          %352 = sbr.rel (%p350) target = $region32
        $region31: #{tpu_custom_call.1} parent=11 // pred_region
          _
        $region32: #{tpu_custom_call.1} parent=11 // pred_fallthru
          _
        // Predicated region
        $region33: #{tpu_custom_call.1} parent=11 // pred_check
          %p353 = pneg %p229
        $region34: #{tpu_custom_call.1} parent=11 // pred_check_branch
          %355 = sbr.rel (%p353) target = $region36
        $region35: #{tpu_custom_call.1} parent=11 // pred_region
          _
        $region36: #{tpu_custom_call.1} parent=11 // pred_fallthru
          _
        // Predicated region
        $region37: #{tpu_custom_call.1} parent=11 // pred_check
          %p356 = pneg %p250
        $region38: #{tpu_custom_call.1} parent=11 // pred_check_branch
          %358 = sbr.rel (%p356) target = $region40
        $region39: #{tpu_custom_call.1} parent=11 // pred_region
          _
        $region40: #{tpu_custom_call.1} parent=11 // pred_fallthru
          _
        // Predicated region
        $region41: #{tpu_custom_call.1} parent=11 // pred_check
          %p359 = pneg %p271
        $region42: #{tpu_custom_call.1} parent=11 // pred_check_branch
          %361 = sbr.rel (%p359) target = $region44
        $region43: #{tpu_custom_call.1} parent=11 // pred_region
          _
        $region44: #{tpu_custom_call.1} parent=11 // pred_fallthru
          _
      $region12: #{tpu_custom_call.1} parent=5 // pred_fallthru
        _
      %p362 = scmp.lt.s32.totalorder %s25, 2
      // Predicated region
      $region45: #{tpu_custom_call.1} parent=5 // pred_check
        %p363 = pneg %p362
      $region46: #{tpu_custom_call.1} parent=5 // pred_check_branch
        %365 = sbr.rel (%p363) target = $region48
      $region47: #{tpu_custom_call.1} parent=5 // pred_region
        // Predicated region
        $region49: #{tpu_custom_call.1} parent=47 // pred_check
          %p366 = pneg %p45
        $region50: #{tpu_custom_call.1} parent=47 // pred_check_branch
          %368 = sbr.rel (%p366) target = $region52
        $region51: #{tpu_custom_call.1} parent=47 // pred_region
          %p369 = scmp.lt.s32.totalorder %s25, 1
          %s370 = scalar_select %p369, %s25, 1
          %s371 = smul.addr %s370, 4
          %s372 = smul.addr %s371, 4
          %s373 = scalar_lea.vmem %s0, %s372
        $region52: #{tpu_custom_call.1} parent=47 // pred_fallthru
          _
        // Predicated region
        $region53: #{tpu_custom_call.1} parent=47 // pred_check
          %p374 = pneg %p71
        $region54: #{tpu_custom_call.1} parent=47 // pred_check_branch
          %376 = sbr.rel (%p374) target = $region56
        $region55: #{tpu_custom_call.1} parent=47 // pred_region
          %p377 = scmp.lt.s32.totalorder %s25, 1
          %s378 = scalar_select %p377, %s25, 1
          %s379 = smul.addr %s378, 4
          %s380 = scalar_lea.vmem %s1, %s379
        $region56: #{tpu_custom_call.1} parent=47 // pred_fallthru
          _
        // Predicated region
        $region57: #{tpu_custom_call.1} parent=47 // pred_check
          %p381 = pneg %p97
        $region58: #{tpu_custom_call.1} parent=47 // pred_check_branch
          %383 = sbr.rel (%p381) target = $region60
        $region59: #{tpu_custom_call.1} parent=47 // pred_region
          %p384 = scmp.lt.s32.totalorder %s25, 1
          %s385 = scalar_select %p384, %s25, 1
          %s386 = smul.addr %s385, 64
          %s387 = smul.addr %s386, 8
          %s388 = scalar_lea.vmem %s2, %s387
        $region60: #{tpu_custom_call.1} parent=47 // pred_fallthru
          _
      $region48: #{tpu_custom_call.1} parent=5 // pred_fallthru
        _
      %p389 = scmp.le.s32.totalorder 1, %s25
      %p390 = scmp.lt.s32.totalorder %s25, 3
      %p391 = pnand %p389, %p390
      %p392 = pneg %p391
      // Predicated region
      $region61: #{tpu_custom_call.1} parent=5 // pred_check
        _
      $region62: #{tpu_custom_call.1} parent=5 // pred_check_branch
        %394 = sbr.rel (%p391) target = $region64
      $region63: #{tpu_custom_call.1} parent=5 // pred_region
        %s395 = ssub.s32 %s25, 1
        %p396 = scmp.lt.s32.totalorder %s30, 1
        %s397 = scalar_select %p396, %s30, 1
        %s398 = smul.addr %s397, 4
        %s399 = smul.addr %s398, 4
        %s400 = scalar_lea.vmem %s0, %s399
        %p401 = pneg %p51
        %p402 = pneg %p48
        %p403 = scmp.lt.s32.totalorder %s30, 1
        %s404 = scalar_select %p403, %s30, 1
        %s405 = smul.addr %s404, 4
        %s406 = scalar_lea.vmem %s1, %s405
        %p407 = pneg %p77
        %p408 = pneg %p74
        %p409 = scmp.lt.s32.totalorder %s30, 1
        %s410 = scalar_select %p409, %s30, 1
        %s411 = smul.addr %s410, 64
        %s412 = smul.addr %s411, 8
        %s413 = scalar_lea.vmem %s2, %s412
        %p414 = pneg %p103
        %p415 = pneg %p100
        %p416 = pneg %p124
        %p417 = pneg %p121
        %p418 = pneg %p145
        %p419 = pneg %p142
        %p420 = pneg %p166
        %p421 = pneg %p163
        %p422 = pneg %p187
        %p423 = pneg %p184
        %p424 = pneg %p208
        %p425 = pneg %p205
        %p426 = pneg %p229
        %p427 = pneg %p226
        %p428 = pneg %p250
        %p429 = pneg %p247
        %p430 = pneg %p271
        %p431 = pneg %p268
        %p432 = pneg %p297
        %p433 = pneg %p294
        %s434 = sand.u32 %s284, 1
        %s435 = scalar_lea.sflag [#allocation3], %s434
        %s436 = sand.u32 %s284, 1
        %s437 = smul.addr %s436, 16
        %s438 = scalar_lea.vmem [#allocation2], %s437
        %p439 = pneg %p323
        %p440 = pneg %p320
        %s441 = sand.u32 %s310, 1
        %s442 = scalar_lea.sflag [#allocation5], %s441
        %s443 = sand.u32 %s310, 1
        %s444 = smul.addr %s443, 16
        %s445 = scalar_lea.vmem [#allocation4], %s444
        %p446 = scmp.lt.s32.totalorder %s30, 1
        %s447 = scalar_select %p446, %s30, 1
        %s448 = smul.addr %s447, 4
        %s449 = smul.addr %s448, 4
        %s450 = scalar_lea.vmem %s0, %s449
        %p451 = scmp.lt.s32.totalorder %s30, 1
        %s452 = scalar_select %p451, %s30, 1
        %s453 = smul.addr %s452, 4
        %s454 = scalar_lea.vmem %s1, %s453
        %p455 = scmp.lt.s32.totalorder %s30, 1
        %s456 = scalar_select %p455, %s30, 1
        %s457 = smul.addr %s456, 64
        %s458 = smul.addr %s457, 8
        %s459 = scalar_lea.vmem %s2, %s458
        %v460 = vld [vmem:[%s450] sm:$0xff]
        %v461 = vld [vmem:[%s450 + $0x8] sm:$0xff]
        %v462 = vld [vmem:[%s4] sm:$0xff]
        %v463 = vld [vmem:[%s4 + $0x8] sm:$0xff]
        %v464 = vld [vmem:[%s459] sm:$0xff]
        %v465 = vld [vmem:[%s459 + $0x8] sm:$0xff]
        %v466 = vld [vmem:[%s459 + $0x10] sm:$0xff]
        %v467 = vld [vmem:[%s459 + $0x18] sm:$0xff]
        %v468 = vld [vmem:[%s459 + $0x20] sm:$0xff]
        %v469 = vld [vmem:[%s459 + $0x28] sm:$0xff]
        %v470 = vld [vmem:[%s459 + $0x30] sm:$0xff]
        %v471 = vld [vmem:[%s459 + $0x38] sm:$0xff]
        %v472 = vld [vmem:[%s459 + $0x40] sm:$0xff]
        %v473 = vld [vmem:[%s459 + $0x48] sm:$0xff]
        %v474 = vld [vmem:[%s459 + $0x50] sm:$0xff]
        %v475 = vld [vmem:[%s459 + $0x58] sm:$0xff]
        %v476 = vld [vmem:[%s459 + $0x60] sm:$0xff]
        %v477 = vld [vmem:[%s459 + $0x68] sm:$0xff]
        %v478 = vld [vmem:[%s459 + $0x70] sm:$0xff]
        %v479 = vld [vmem:[%s459 + $0x78] sm:$0xff]
        %v480 = vld [vmem:[%s459 + $0x80] sm:$0xff]
        %v481 = vld [vmem:[%s459 + $0x88] sm:$0xff]
        %v482 = vld [vmem:[%s459 + $0x90] sm:$0xff]
        %v483 = vld [vmem:[%s459 + $0x98] sm:$0xff]
        %v484 = vld [vmem:[%s459 + $0xa0] sm:$0xff]
        %v485 = vld [vmem:[%s459 + $0xa8] sm:$0xff]
        %v486 = vld [vmem:[%s459 + $0xb0] sm:$0xff]
        %v487 = vld [vmem:[%s459 + $0xb8] sm:$0xff]
        %v488 = vld [vmem:[%s459 + $0xc0] sm:$0xff]
        %v489 = vld [vmem:[%s459 + $0xc8] sm:$0xff]
        %v490 = vld [vmem:[%s459 + $0xd0] sm:$0xff]
        %v491 = vld [vmem:[%s459 + $0xd8] sm:$0xff]
        %v492 = vld [vmem:[%s459 + $0xe0] sm:$0xff]
        %v493 = vld [vmem:[%s459 + $0xe8] sm:$0xff]
        %v494 = vld [vmem:[%s459 + $0xf0] sm:$0xff]
        %v495 = vld [vmem:[%s459 + $0xf8] sm:$0xff]
        %v496 = vld [vmem:[%s459 + $0x100] sm:$0xff]
        %v497 = vld [vmem:[%s459 + $0x108] sm:$0xff]
        %v498 = vld [vmem:[%s459 + $0x110] sm:$0xff]
        %v499 = vld [vmem:[%s459 + $0x118] sm:$0xff]
        %v500 = vld [vmem:[%s459 + $0x120] sm:$0xff]
        %v501 = vld [vmem:[%s459 + $0x128] sm:$0xff]
        %v502 = vld [vmem:[%s459 + $0x130] sm:$0xff]
        %v503 = vld [vmem:[%s459 + $0x138] sm:$0xff]
        %v504 = vld [vmem:[%s459 + $0x140] sm:$0xff]
        %v505 = vld [vmem:[%s459 + $0x148] sm:$0xff]
        %v506 = vld [vmem:[%s459 + $0x150] sm:$0xff]
        %v507 = vld [vmem:[%s459 + $0x158] sm:$0xff]
        %v508 = vld [vmem:[%s459 + $0x160] sm:$0xff]
        %v509 = vld [vmem:[%s459 + $0x168] sm:$0xff]
        %v510 = vld [vmem:[%s459 + $0x170] sm:$0xff]
        %v511 = vld [vmem:[%s459 + $0x178] sm:$0xff]
        %v512 = vld [vmem:[%s459 + $0x180] sm:$0xff]
        %v513 = vld [vmem:[%s459 + $0x188] sm:$0xff]
        %v514 = vld [vmem:[%s459 + $0x190] sm:$0xff]
        %v515 = vld [vmem:[%s459 + $0x198] sm:$0xff]
        %v516 = vld [vmem:[%s459 + $0x1a0] sm:$0xff]
        %v517 = vld [vmem:[%s459 + $0x1a8] sm:$0xff]
        %v518 = vld [vmem:[%s459 + $0x1b0] sm:$0xff]
        %v519 = vld [vmem:[%s459 + $0x1b8] sm:$0xff]
        %v520 = vld [vmem:[%s459 + $0x1c0] sm:$0xff]
        %v521 = vld [vmem:[%s459 + $0x1c8] sm:$0xff]
        %v522 = vld [vmem:[%s459 + $0x1d0] sm:$0xff]
        %v523 = vld [vmem:[%s459 + $0x1d8] sm:$0xff]
        %v524 = vld [vmem:[%s459 + $0x1e0] sm:$0xff]
        %v525 = vld [vmem:[%s459 + $0x1e8] sm:$0xff]
        %v526 = vld [vmem:[%s459 + $0x1f0] sm:$0xff]
        %v527 = vld [vmem:[%s459 + $0x1f8] sm:$0xff]
        %v528 = vld [vmem:[%s5] sm:$0xf]
        %v531 = vcombine.high %v462, %v462
        %v532 = vcombine.high %v463, %v463
        %535 = vmatprep.subr.mxu0 0.0
        %536 = vmatpush1.msra.mxu0 %v464
        %537 = vmatprep.subr.mxu0 0.0
        %538 = vmatpush1.msra.mxu0 %v465
        %539 = vmatprep.subr.mxu0 0.0
        %540 = vmatpush1.msra.mxu0 %v466
        %541 = vmatprep.subr.mxu0 0.0
        %542 = vmatpush1.msra.mxu0 %v467
        %543 = vmatprep.subr.mxu0 0.0
        %544 = vmatpush1.msra.mxu0 %v468
        %545 = vmatprep.subr.mxu0 0.0
        %546 = vmatpush1.msra.mxu0 %v469
        %547 = vmatprep.subr.mxu0 0.0
        %548 = vmatpush1.msra.mxu0 %v470
        %549 = vmatprep.subr.mxu0 0.0
        %550 = vmatpush1.msra.mxu0 %v471
        %551 = vmatprep.subr.mxu0 0.0
        %552 = vmatpush1.msra.mxu0 %v472
        %553 = vmatprep.subr.mxu0 0.0
        %554 = vmatpush1.msra.mxu0 %v473
        %555 = vmatprep.subr.mxu0 0.0
        %556 = vmatpush1.msra.mxu0 %v474
        %557 = vmatprep.subr.mxu0 0.0
        %558 = vmatpush1.msra.mxu0 %v475
        %559 = vmatprep.subr.mxu0 0.0
        %560 = vmatpush1.msra.mxu0 %v476
        %561 = vmatprep.subr.mxu0 0.0
        %562 = vmatpush1.msra.mxu0 %v477
        %563 = vmatprep.subr.mxu0 0.0
        %564 = vmatpush1.msra.mxu0 %v478
        %565 = vmatprep.subr.mxu0 0.0
        %566 = vmatpush1.msra.mxu0 %v479
        %567 = vmatprep.subr.mxu0 0.0
        %568 = vmatpush1.msra.mxu0 %v480
        %569 = vmatprep.subr.mxu0 0.0
        %570 = vmatpush1.msra.mxu0 %v481
        %571 = vmatprep.subr.mxu0 0.0
        %572 = vmatpush1.msra.mxu0 %v482
        %573 = vmatprep.subr.mxu0 0.0
        %574 = vmatpush1.msra.mxu0 %v483
        %575 = vmatprep.subr.mxu0 0.0
        %576 = vmatpush1.msra.mxu0 %v484
        %577 = vmatprep.subr.mxu0 0.0
        %578 = vmatpush1.msra.mxu0 %v485
        %579 = vmatprep.subr.mxu0 0.0
        %580 = vmatpush1.msra.mxu0 %v486
        %581 = vmatprep.subr.mxu0 0.0
        %582 = vmatpush1.msra.mxu0 %v487
        %583 = vmatprep.subr.mxu0 0.0
        %584 = vmatpush1.msra.mxu0 %v488
        %585 = vmatprep.subr.mxu0 0.0
        %586 = vmatpush1.msra.mxu0 %v489
        %587 = vmatprep.subr.mxu0 0.0
        %588 = vmatpush1.msra.mxu0 %v490
        %589 = vmatprep.subr.mxu0 0.0
        %590 = vmatpush1.msra.mxu0 %v491
        %591 = vmatprep.subr.mxu0 0.0
        %592 = vmatpush1.msra.mxu0 %v492
        %593 = vmatprep.subr.mxu0 0.0
        %594 = vmatpush1.msra.mxu0 %v493
        %595 = vmatprep.subr.mxu0 0.0
        %596 = vmatpush1.msra.mxu0 %v494
        %597 = vmatprep.subr.mxu0 0.0
        %598 = vmatpush1.msra.mxu0 %v495
        %599 = vmatprep.mubr.f32.mxu0 %v531
        %600 = vmatmul.mubr.f32.gmra.mrb[0].mxu0 %v462
        %v601 = vpop.f32.mrb[0].mxu0
        %v602 = vadd.f32 %v528, %v601
        %v603 = vpop.f32.mrb[0].mxu0
        %604 = vdwg.mxu0
        %605 = vmatprep.subr.mxu0 0.0
        %606 = vmatpush1.msra.mxu0 %v496
        %607 = vmatprep.subr.mxu0 0.0
        %608 = vmatpush1.msra.mxu0 %v497
        %609 = vmatprep.subr.mxu0 0.0
        %610 = vmatpush1.msra.mxu0 %v498
        %611 = vmatprep.subr.mxu0 0.0
        %612 = vmatpush1.msra.mxu0 %v499
        %613 = vmatprep.subr.mxu0 0.0
        %614 = vmatpush1.msra.mxu0 %v500
        %615 = vmatprep.subr.mxu0 0.0
        %616 = vmatpush1.msra.mxu0 %v501
        %617 = vmatprep.subr.mxu0 0.0
        %618 = vmatpush1.msra.mxu0 %v502
        %619 = vmatprep.subr.mxu0 0.0
        %620 = vmatpush1.msra.mxu0 %v503
        %621 = vmatprep.subr.mxu0 0.0
        %622 = vmatpush1.msra.mxu0 %v504
        %623 = vmatprep.subr.mxu0 0.0
        %624 = vmatpush1.msra.mxu0 %v505
        %625 = vmatprep.subr.mxu0 0.0
        %626 = vmatpush1.msra.mxu0 %v506
        %627 = vmatprep.subr.mxu0 0.0
        %628 = vmatpush1.msra.mxu0 %v507
        %629 = vmatprep.subr.mxu0 0.0
        %630 = vmatpush1.msra.mxu0 %v508
        %631 = vmatprep.subr.mxu0 0.0
        %632 = vmatpush1.msra.mxu0 %v509
        %633 = vmatprep.subr.mxu0 0.0
        %634 = vmatpush1.msra.mxu0 %v510
        %635 = vmatprep.subr.mxu0 0.0
        %636 = vmatpush1.msra.mxu0 %v511
        %637 = vmatprep.subr.mxu0 0.0
        %638 = vmatpush1.msra.mxu0 %v512
        %639 = vmatprep.subr.mxu0 0.0
        %640 = vmatpush1.msra.mxu0 %v513
        %641 = vmatprep.subr.mxu0 0.0
        %642 = vmatpush1.msra.mxu0 %v514
        %643 = vmatprep.subr.mxu0 0.0
        %644 = vmatpush1.msra.mxu0 %v515
        %645 = vmatprep.subr.mxu0 0.0
        %646 = vmatpush1.msra.mxu0 %v516
        %647 = vmatprep.subr.mxu0 0.0
        %648 = vmatpush1.msra.mxu0 %v517
        %649 = vmatprep.subr.mxu0 0.0
        %650 = vmatpush1.msra.mxu0 %v518
        %651 = vmatprep.subr.mxu0 0.0
        %652 = vmatpush1.msra.mxu0 %v519
        %653 = vmatprep.subr.mxu0 0.0
        %654 = vmatpush1.msra.mxu0 %v520
        %655 = vmatprep.subr.mxu0 0.0
        %656 = vmatpush1.msra.mxu0 %v521
        %657 = vmatprep.subr.mxu0 0.0
        %658 = vmatpush1.msra.mxu0 %v522
        %659 = vmatprep.subr.mxu0 0.0
        %660 = vmatpush1.msra.mxu0 %v523
        %661 = vmatprep.subr.mxu0 0.0
        %662 = vmatpush1.msra.mxu0 %v524
        %663 = vmatprep.subr.mxu0 0.0
        %664 = vmatpush1.msra.mxu0 %v525
        %665 = vmatprep.subr.mxu0 0.0
        %666 = vmatpush1.msra.mxu0 %v526
        %667 = vmatprep.subr.mxu0 0.0
        %668 = vmatpush1.msra.mxu0 %v527
        %669 = vmatprep.mubr.f32.mxu0 %v532
        %670 = vmatmul.mubr.f32.gmra.mrb[0].mxu0 %v463
        %v671 = vpop.f32.mrb[0].mxu0
        %v672 = vadd.f32 %v602, %v671
        %v673 = vpop.f32.mrb[0].mxu0
        %674 = vdwg.mxu0
        %v675 = vld [vmem:[%s3] sm:$0xf]
        %v677 = vlaneseq
        %v678 = vshrl.u32 %v677, 7
        %v679 = vsub.s32 0, %v678
        %v680 = vrot.slane %v675, %v679
        %v681 = vlaneseq
        %v682 = vshrl.u32 %v681, 7
        %v683 = vsub.s32 1, %v682
        %v684 = vrot.slane %v675, %v683
        %v685 = vlaneseq
        %v686 = vshrl.u32 %v685, 7
        %v687 = vsub.s32 2, %v686
        %v688 = vrot.slane %v675, %v687
        %v689 = vlaneseq
        %v690 = vshrl.u32 %v689, 7
        %v691 = vsub.s32 3, %v690
        %v692 = vrot.slane %v675, %v691
        %698 = vset.pattern.permute.xlu0 0
        %699 = vperm.xlu0 %698, %v672
        %v700 = vpop.permute.xlu0 %699
        %v702 = vmul.f32 %v680, %v700
        %v703 = vmul.f32 %v684, %v700
        %v704 = vmul.f32 %v688, %v700
        %v705 = vmul.f32 %v692, %v700
        %v710 = vcombine.low %v702, %v703
        %v711 = vcombine.low %v704, %v705
        %v714 = vadd.f32 %v460, %v710
        %v715 = vadd.f32 %v461, %v711
        %v718 = vcombine.high %v714, %v714
        %v719 = vcombine.high %v715, %v715
        %v722 = vcombine.low %v714, %v714
        %v723 = vcombine.low %v715, %v715
        %724 = vrot.lane.b32.xlu0 %v722, 126
        %v725 = vpop.permute.xlu0 %724
        %726 = vrot.lane.b32.xlu0 %v714, 126
        %v727 = vpop.permute.xlu0 %726
        %728 = vrot.lane.b32.xlu0 %v723, 126
        %v729 = vpop.permute.xlu0 %728
        %730 = vrot.lane.b32.xlu0 %v715, 126
        %v731 = vpop.permute.xlu0 %730
        %vm732 = vcmask 1031168
        %v733 = vsel %vm732, %v725, %v727
        %v734 = vsel %vm732, %v727, %v729
        %v735 = vsel %vm732, %v729, %v731
        %740 = vrot.lane.b32.xlu0 %v714, 124
        %v741 = vpop.permute.xlu0 %740
        %742 = vrot.lane.b32.xlu0 %v718, 124
        %v743 = vpop.permute.xlu0 %742
        %744 = vrot.lane.b32.xlu0 %v715, 124
        %v745 = vpop.permute.xlu0 %744
        %746 = vrot.lane.b32.xlu0 %v719, 124
        %v747 = vpop.permute.xlu0 %746
        %vm748 = vcmask 1014784
        %v749 = vsel %vm748, %v741, %v743
        %v750 = vsel %vm748, %v743, %v745
        %v751 = vsel %vm748, %v745, %v747
        %756 = vrot.lane.b32.xlu0 %v722, 88
        %v757 = vpop.permute.xlu0 %756
        %758 = vrot.lane.b32.xlu0 %v714, 88
        %v759 = vpop.permute.xlu0 %758
        %760 = vrot.lane.b32.xlu0 %v723, 88
        %v761 = vpop.permute.xlu0 %760
        %762 = vrot.lane.b32.xlu0 %v715, 88
        %v763 = vpop.permute.xlu0 %762
        %vm764 = vcmask 719872
        %v765 = vsel %vm764, %v757, %v759
        %v766 = vsel %vm764, %v759, %v761
        %v767 = vsel %vm764, %v761, %v763
        %772 = vrot.lane.b32.xlu0 %v714, 86
        %v773 = vpop.permute.xlu0 %772
        %774 = vrot.lane.b32.xlu0 %v718, 86
        %v775 = vpop.permute.xlu0 %774
        %776 = vrot.lane.b32.xlu0 %v715, 86
        %v777 = vpop.permute.xlu0 %776
        %778 = vrot.lane.b32.xlu0 %v719, 86
        %v779 = vpop.permute.xlu0 %778
        %vm780 = vcmask 703488
        %v781 = vsel %vm780, %v773, %v775
        %v782 = vsel %vm780, %v775, %v777
        %v783 = vsel %vm780, %v777, %v779
        %788 = vrot.lane.b32.xlu0 %v722, 84
        %v789 = vpop.permute.xlu0 %788
        %790 = vrot.lane.b32.xlu0 %v714, 84
        %v791 = vpop.permute.xlu0 %790
        %792 = vrot.lane.b32.xlu0 %v723, 84
        %v793 = vpop.permute.xlu0 %792
        %794 = vrot.lane.b32.xlu0 %v715, 84
        %v795 = vpop.permute.xlu0 %794
        %vm796 = vcmask 687104
        %v797 = vsel %vm796, %v789, %v791
        %v798 = vsel %vm796, %v791, %v793
        %v799 = vsel %vm796, %v793, %v795
        %804 = vrot.lane.b32.xlu0 %v714, 48
        %v805 = vpop.permute.xlu0 %804
        %806 = vrot.lane.b32.xlu0 %v718, 48
        %v807 = vpop.permute.xlu0 %806
        %808 = vrot.lane.b32.xlu0 %v715, 48
        %v809 = vpop.permute.xlu0 %808
        %810 = vrot.lane.b32.xlu0 %v719, 48
        %v811 = vpop.permute.xlu0 %810
        %vm812 = vcmask 392192
        %v813 = vsel %vm812, %v805, %v807
        %v814 = vsel %vm812, %v807, %v809
        %v815 = vsel %vm812, %v809, %v811
        %820 = vrot.lane.b32.xlu0 %v722, 46
        %v821 = vpop.permute.xlu0 %820
        %822 = vrot.lane.b32.xlu0 %v714, 46
        %v823 = vpop.permute.xlu0 %822
        %824 = vrot.lane.b32.xlu0 %v723, 46
        %v825 = vpop.permute.xlu0 %824
        %826 = vrot.lane.b32.xlu0 %v715, 46
        %v827 = vpop.permute.xlu0 %826
        %vm828 = vcmask 375808
        %v829 = vsel %vm828, %v821, %v823
        %v830 = vsel %vm828, %v823, %v825
        %v831 = vsel %vm828, %v825, %v827
        %836 = vrot.lane.b32.xlu0 %v714, 44
        %v837 = vpop.permute.xlu0 %836
        %838 = vrot.lane.b32.xlu0 %v718, 44
        %v839 = vpop.permute.xlu0 %838
        %840 = vrot.lane.b32.xlu0 %v715, 44
        %v841 = vpop.permute.xlu0 %840
        %842 = vrot.lane.b32.xlu0 %v719, 44
        %v843 = vpop.permute.xlu0 %842
        %vm844 = vcmask 359424
        %v845 = vsel %vm844, %v837, %v839
        %v846 = vsel %vm844, %v839, %v841
        %v847 = vsel %vm844, %v841, %v843
        %vm848 = vcmask 1043456
        %v849 = vsel %vm848, %v714, %v733
        %v850 = vsel %vm848, %v718, %v734
        %v851 = vsel %vm848, %v715, %v735
        %v852 = vsel %vm848, %v719, %v731
        %v853 = vsel %vm848, %v749, %v765
        %v854 = vsel %vm848, %v750, %v766
        %v855 = vsel %vm848, %v751, %v767
        %v856 = vsel %vm848, %v747, %v763
        %v857 = vsel %vm848, %v781, %v797
        %v858 = vsel %vm848, %v782, %v798
        %v859 = vsel %vm848, %v783, %v799
        %v860 = vsel %vm848, %v779, %v795
        %v861 = vsel %vm848, %v813, %v829
        %v862 = vsel %vm848, %v814, %v830
        %v863 = vsel %vm848, %v815, %v831
        %v864 = vsel %vm848, %v811, %v827
        %v865 = vld [vmem:[%s6] sm:$0xff]
        %v866 = vld [vmem:[%s8] sm:$0xff]
        %v867 = vld [vmem:[%s454] sm:$0xf]
        %869 = vset.pattern.permute.xlu0 0
        %870 = vperm.xlu0 %869, %v866
        %v871 = vpop.permute.xlu0 %870
        %v874 = vlaneseq
        %v875 = vshrl.u32 %v874, 7
        %v876 = vsub.s32 0, %v875
        %v877 = vrot.slane %v867, %v876
        %v878 = vlaneseq
        %v879 = vshrl.u32 %v878, 7
        %v880 = vsub.s32 1, %v879
        %v881 = vrot.slane %v867, %v880
        %v882 = vlaneseq
        %v883 = vshrl.u32 %v882, 7
        %v884 = vsub.s32 2, %v883
        %v885 = vrot.slane %v867, %v884
        %v886 = vlaneseq
        %v887 = vshrl.u32 %v886, 7
        %v888 = vsub.s32 3, %v887
        %v889 = vrot.slane %v867, %v888
        %v894 = vmul.f32 %v871, %v877
        %v895 = vmul.f32 %v871, %v881
        %v896 = vmul.f32 %v871, %v885
        %v897 = vmul.f32 %v871, %v889
        %vm898 = vcmask 293888
        %v900 = vsel %vm898, %v865, 0
        %v902 = vsel %vm848, %v845, 0
        %v904 = vsel %vm848, %v846, 0
        %v906 = vsel %vm848, %v847, 0
        %v908 = vsel %vm848, %v843, 0
        %910 = vmatprep.subr.mxu0 %v850
        %911 = vmatpush1.msra.mxu0 %v849
        %912 = vmatprep.subr.mxu0 %v854
        %913 = vmatpush1.msra.mxu0 %v853
        %914 = vmatprep.subr.mxu0 %v858
        %915 = vmatpush1.msra.mxu0 %v857
        %916 = vmatprep.subr.mxu0 %v862
        %917 = vmatpush1.msra.mxu0 %v861
        %918 = vmatprep.subr.mxu0 %v904
        %919 = vmatpush1.msra.mxu0 %v902
        %920 = vmatprep.subr.mxu0 0.0
        %921 = vmatpush1.msra.mxu0 0.0
        %922 = vmatprep.subr.mxu0 0.0
        %923 = vmatpush1.msra.mxu0 0.0
        %924 = vmatprep.subr.mxu0 0.0
        %925 = vmatpush1.msra.mxu0 0.0
        %926 = vmatprep.subr.mxu0 0.0
        %927 = vmatpush1.msra.mxu0 0.0
        %928 = vmatprep.subr.mxu0 0.0
        %929 = vmatpush1.msra.mxu0 0.0
        %930 = vmatprep.subr.mxu0 0.0
        %931 = vmatpush1.msra.mxu0 0.0
        %932 = vmatprep.subr.mxu0 0.0
        %933 = vmatpush1.msra.mxu0 0.0
        %934 = vmatprep.subr.mxu0 0.0
        %935 = vmatpush1.msra.mxu0 0.0
        %936 = vmatprep.subr.mxu0 0.0
        %937 = vmatpush1.msra.mxu0 0.0
        %938 = vmatprep.subr.mxu0 0.0
        %939 = vmatpush1.msra.mxu0 0.0
        %940 = vmatprep.subr.mxu0 0.0
        %941 = vmatpush1.msra.mxu0 0.0
        %942 = vmatprep.subr.mxu0 0.0
        %943 = vmatpush1.msra.mxu0 0.0
        %944 = vmatprep.subr.mxu0 0.0
        %945 = vmatpush1.msra.mxu0 0.0
        %946 = vmatprep.subr.mxu0 0.0
        %947 = vmatpush1.msra.mxu0 0.0
        %948 = vmatprep.subr.mxu0 0.0
        %949 = vmatpush1.msra.mxu0 0.0
        %950 = vmatprep.subr.mxu0 0.0
        %951 = vmatpush1.msra.mxu0 0.0
        %952 = vmatprep.subr.mxu0 0.0
        %953 = vmatpush1.msra.mxu0 0.0
        %954 = vmatprep.subr.mxu0 0.0
        %955 = vmatpush1.msra.mxu0 0.0
        %956 = vmatprep.subr.mxu0 0.0
        %957 = vmatpush1.msra.mxu0 0.0
        %958 = vmatprep.subr.mxu0 0.0
        %959 = vmatpush1.msra.mxu0 0.0
        %960 = vmatprep.subr.mxu0 0.0
        %961 = vmatpush1.msra.mxu0 0.0
        %962 = vmatprep.subr.mxu0 0.0
        %963 = vmatpush1.msra.mxu0 0.0
        %964 = vmatprep.subr.mxu0 0.0
        %965 = vmatpush1.msra.mxu0 0.0
        %966 = vmatprep.subr.mxu0 0.0
        %967 = vmatpush1.msra.mxu0 0.0
        %968 = vmatprep.subr.mxu0 0.0
        %969 = vmatpush1.msra.mxu0 0.0
        %970 = vmatprep.subr.mxu0 0.0
        %971 = vmatpush1.msra.mxu0 0.0
        %972 = vmatprep.subr.mxu0 0.0
        %973 = vmatpush1.msra.mxu0 0.0
        %974 = vmatprep.mubr.f32.mxu0 0.0
        %975 = vmatmul.mubr.f32.gmra.mrb[0].mxu0 %v900
        %v976 = vpop.f32.mrb[0].mxu0
        %v977 = vadd.f32 %v894, %v976
        %v978 = vpop.f32.mrb[0].mxu0
        %v979 = vadd.f32 %v895, %v978
        %980 = vdwg.mxu0
        %981 = vmatprep.subr.mxu0 %v852
        %982 = vmatpush1.msra.mxu0 %v851
        %983 = vmatprep.subr.mxu0 %v856
        %984 = vmatpush1.msra.mxu0 %v855
        %985 = vmatprep.subr.mxu0 %v860
        %986 = vmatpush1.msra.mxu0 %v859
        %987 = vmatprep.subr.mxu0 %v864
        %988 = vmatpush1.msra.mxu0 %v863
        %989 = vmatprep.subr.mxu0 %v908
        %990 = vmatpush1.msra.mxu0 %v906
        %991 = vmatprep.subr.mxu0 0.0
        %992 = vmatpush1.msra.mxu0 0.0
        %993 = vmatprep.subr.mxu0 0.0
        %994 = vmatpush1.msra.mxu0 0.0
        %995 = vmatprep.subr.mxu0 0.0
        %996 = vmatpush1.msra.mxu0 0.0
        %997 = vmatprep.subr.mxu0 0.0
        %998 = vmatpush1.msra.mxu0 0.0
        %999 = vmatprep.subr.mxu0 0.0
        %1000 = vmatpush1.msra.mxu0 0.0
        %1001 = vmatprep.subr.mxu0 0.0
        %1002 = vmatpush1.msra.mxu0 0.0
        %1003 = vmatprep.subr.mxu0 0.0
        %1004 = vmatpush1.msra.mxu0 0.0
        %1005 = vmatprep.subr.mxu0 0.0
        %1006 = vmatpush1.msra.mxu0 0.0
        %1007 = vmatprep.subr.mxu0 0.0
        %1008 = vmatpush1.msra.mxu0 0.0
        %1009 = vmatprep.subr.mxu0 0.0
        %1010 = vmatpush1.msra.mxu0 0.0
        %1011 = vmatprep.subr.mxu0 0.0
        %1012 = vmatpush1.msra.mxu0 0.0
        %1013 = vmatprep.subr.mxu0 0.0
        %1014 = vmatpush1.msra.mxu0 0.0
        %1015 = vmatprep.subr.mxu0 0.0
        %1016 = vmatpush1.msra.mxu0 0.0
        %1017 = vmatprep.subr.mxu0 0.0
        %1018 = vmatpush1.msra.mxu0 0.0
        %1019 = vmatprep.subr.mxu0 0.0
        %1020 = vmatpush1.msra.mxu0 0.0
        %1021 = vmatprep.subr.mxu0 0.0
        %1022 = vmatpush1.msra.mxu0 0.0
        %1023 = vmatprep.subr.mxu0 0.0
        %1024 = vmatpush1.msra.mxu0 0.0
        %1025 = vmatprep.subr.mxu0 0.0
        %1026 = vmatpush1.msra.mxu0 0.0
        %1027 = vmatprep.subr.mxu0 0.0
        %1028 = vmatpush1.msra.mxu0 0.0
        %1029 = vmatprep.subr.mxu0 0.0
        %1030 = vmatpush1.msra.mxu0 0.0
        %1031 = vmatprep.subr.mxu0 0.0
        %1032 = vmatpush1.msra.mxu0 0.0
        %1033 = vmatprep.subr.mxu0 0.0
        %1034 = vmatpush1.msra.mxu0 0.0
        %1035 = vmatprep.subr.mxu0 0.0
        %1036 = vmatpush1.msra.mxu0 0.0
        %1037 = vmatprep.subr.mxu0 0.0
        %1038 = vmatpush1.msra.mxu0 0.0
        %1039 = vmatprep.subr.mxu0 0.0
        %1040 = vmatpush1.msra.mxu0 0.0
        %1041 = vmatprep.subr.mxu0 0.0
        %1042 = vmatpush1.msra.mxu0 0.0
        %1043 = vmatprep.subr.mxu0 0.0
        %1044 = vmatpush1.msra.mxu0 0.0
        %1045 = vmatprep.mubr.f32.mxu0 0.0
        %1046 = vmatmul.mubr.f32.gmra.mrb[0].mxu0 %v900
        %v1047 = vpop.f32.mrb[0].mxu0
        %v1048 = vadd.f32 %v896, %v1047
        %v1049 = vpop.f32.mrb[0].mxu0
        %v1050 = vadd.f32 %v897, %v1049
        %1051 = vdwg.mxu0
        %v1052 = vld [vmem:[%s7] sm:$0xff]
        %1054 = vset.pattern.permute.xlu0 0
        %1055 = vperm.xlu0 %1054, %v1052
        %v1056 = vpop.permute.xlu0 %1055
        %v1058 = vadd.f32 %v977, %v1056
        %v1059 = vadd.f32 %v979, %v1056
        %v1060 = vadd.f32 %v1048, %v1056
        %v1061 = vadd.f32 %v1050, %v1056
        %v1062 = vxor.u32 %v1058, 2147483648
        %v1063 = vxor.u32 %v1059, 2147483648
        %v1064 = vxor.u32 %v1060, 2147483648
        %v1065 = vxor.u32 %v1061, 2147483648
        %v1066 = vmul.f32 %v1062, 1.442695
        %v1067 = vpow.pop %v1066
        %v1068 = vmul.f32 %v1063, 1.442695
        %v1069 = vpow.pop %v1068
        %v1070 = vmul.f32 %v1064, 1.442695
        %v1071 = vpow.pop %v1070
        %v1072 = vmul.f32 %v1065, 1.442695
        %v1073 = vpow.pop %v1072
        %v1074 = vadd.f32 %v1067, 1.0
        %v1075 = vadd.f32 %v1069, 1.0
        %v1076 = vadd.f32 %v1071, 1.0
        %v1077 = vadd.f32 %v1073, 1.0
        %v1078 = vrcp.pop %v1074
        %v1079 = vmul.f32 1.0, %v1078
        %v1080 = vrcp.pop %v1075
        %v1081 = vmul.f32 1.0, %v1080
        %v1082 = vrcp.pop %v1076
        %v1083 = vmul.f32 1.0, %v1082
        %v1084 = vrcp.pop %v1077
        %v1085 = vmul.f32 1.0, %v1084
        %v1086 = vtanh.pop %v1058
        %v1087 = vtanh.pop %v1059
        %v1088 = vtanh.pop %v1060
        %v1089 = vtanh.pop %v1061
        %v1094 = vrot.slane %v1086, 4
        %v1095 = vrot.slane %v1087, 4
        %v1096 = vrot.slane %v1088, 4
        %v1097 = vrot.slane %v1089, 4
        %v1102 = vmul.f32 %v1079, %v1094
        %v1103 = vmul.f32 %v1081, %v1095
        %v1104 = vmul.f32 %v1083, %v1096
        %v1105 = vmul.f32 %v1085, %v1097
        %v1106 = vld [vmem:[%s9] sm:$0xff]
        %v1107 = vld [vmem:[%s10] sm:$0xff]
        %1109 = vset.pattern.permute.xlu0 0
        %1110 = vperm.xlu0 %1109, %v1107
        %v1111 = vpop.permute.xlu0 %1110
        %vm1113 = vcmask 31744
        %v1115 = vsel %vm1113, %v1106, 0
        %v1118 = vsel %vm848, %v1102, 0
        %v1121 = vsel %vm848, %v1103, 0
        %v1124 = vsel %vm848, %v1104, 0
        %v1127 = vsel %vm848, %v1105, 0
        %1129 = vmatprep.subr.mxu0 %v1121
        %1130 = vmatpush1.msra.mxu0 %v1118
        %1131 = vmatprep.subr.mxu0 0.0
        %1132 = vmatpush1.msra.mxu0 0.0
        %1133 = vmatprep.subr.mxu0 0.0
        %1134 = vmatpush1.msra.mxu0 0.0
        %1135 = vmatprep.subr.mxu0 0.0
        %1136 = vmatpush1.msra.mxu0 0.0
        %1137 = vmatprep.subr.mxu0 0.0
        %1138 = vmatpush1.msra.mxu0 0.0
        %1139 = vmatprep.subr.mxu0 0.0
        %1140 = vmatpush1.msra.mxu0 0.0
        %1141 = vmatprep.subr.mxu0 0.0
        %1142 = vmatpush1.msra.mxu0 0.0
        %1143 = vmatprep.subr.mxu0 0.0
        %1144 = vmatpush1.msra.mxu0 0.0
        %1145 = vmatprep.subr.mxu0 0.0
        %1146 = vmatpush1.msra.mxu0 0.0
        %1147 = vmatprep.subr.mxu0 0.0
        %1148 = vmatpush1.msra.mxu0 0.0
        %1149 = vmatprep.subr.mxu0 0.0
        %1150 = vmatpush1.msra.mxu0 0.0
        %1151 = vmatprep.subr.mxu0 0.0
        %1152 = vmatpush1.msra.mxu0 0.0
        %1153 = vmatprep.subr.mxu0 0.0
        %1154 = vmatpush1.msra.mxu0 0.0
        %1155 = vmatprep.subr.mxu0 0.0
        %1156 = vmatpush1.msra.mxu0 0.0
        %1157 = vmatprep.subr.mxu0 0.0
        %1158 = vmatpush1.msra.mxu0 0.0
        %1159 = vmatprep.subr.mxu0 0.0
        %1160 = vmatpush1.msra.mxu0 0.0
        %1161 = vmatprep.subr.mxu0 0.0
        %1162 = vmatpush1.msra.mxu0 0.0
        %1163 = vmatprep.subr.mxu0 0.0
        %1164 = vmatpush1.msra.mxu0 0.0
        %1165 = vmatprep.subr.mxu0 0.0
        %1166 = vmatpush1.msra.mxu0 0.0
        %1167 = vmatprep.subr.mxu0 0.0
        %1168 = vmatpush1.msra.mxu0 0.0
        %1169 = vmatprep.subr.mxu0 0.0
        %1170 = vmatpush1.msra.mxu0 0.0
        %1171 = vmatprep.subr.mxu0 0.0
        %1172 = vmatpush1.msra.mxu0 0.0
        %1173 = vmatprep.subr.mxu0 0.0
        %1174 = vmatpush1.msra.mxu0 0.0
        %1175 = vmatprep.subr.mxu0 0.0
        %1176 = vmatpush1.msra.mxu0 0.0
        %1177 = vmatprep.subr.mxu0 0.0
        %1178 = vmatpush1.msra.mxu0 0.0
        %1179 = vmatprep.subr.mxu0 0.0
        %1180 = vmatpush1.msra.mxu0 0.0
        %1181 = vmatprep.subr.mxu0 0.0
        %1182 = vmatpush1.msra.mxu0 0.0
        %1183 = vmatprep.subr.mxu0 0.0
        %1184 = vmatpush1.msra.mxu0 0.0
        %1185 = vmatprep.subr.mxu0 0.0
        %1186 = vmatpush1.msra.mxu0 0.0
        %1187 = vmatprep.subr.mxu0 0.0
        %1188 = vmatpush1.msra.mxu0 0.0
        %1189 = vmatprep.subr.mxu0 0.0
        %1190 = vmatpush1.msra.mxu0 0.0
        %1191 = vmatprep.subr.mxu0 0.0
        %1192 = vmatpush1.msra.mxu0 0.0
        %1193 = vmatprep.mubr.f32.mxu0 0.0
        %1194 = vmatmul.mubr.f32.gmra.mrb[0].mxu0 %v1115
        %v1195 = vpop.f32.mrb[0].mxu0
        %v1196 = vadd.f32 %v1111, %v1195
        %v1197 = vpop.f32.mrb[0].mxu0
        %v1198 = vadd.f32 %v1111, %v1197
        %1199 = vdwg.mxu0
        %1200 = vmatprep.subr.mxu0 %v1127
        %1201 = vmatpush1.msra.mxu0 %v1124
        %1202 = vmatprep.subr.mxu0 0.0
        %1203 = vmatpush1.msra.mxu0 0.0
        %1204 = vmatprep.subr.mxu0 0.0
        %1205 = vmatpush1.msra.mxu0 0.0
        %1206 = vmatprep.subr.mxu0 0.0
        %1207 = vmatpush1.msra.mxu0 0.0
        %1208 = vmatprep.subr.mxu0 0.0
        %1209 = vmatpush1.msra.mxu0 0.0
        %1210 = vmatprep.subr.mxu0 0.0
        %1211 = vmatpush1.msra.mxu0 0.0
        %1212 = vmatprep.subr.mxu0 0.0
        %1213 = vmatpush1.msra.mxu0 0.0
        %1214 = vmatprep.subr.mxu0 0.0
        %1215 = vmatpush1.msra.mxu0 0.0
        %1216 = vmatprep.subr.mxu0 0.0
        %1217 = vmatpush1.msra.mxu0 0.0
        %1218 = vmatprep.subr.mxu0 0.0
        %1219 = vmatpush1.msra.mxu0 0.0
        %1220 = vmatprep.subr.mxu0 0.0
        %1221 = vmatpush1.msra.mxu0 0.0
        %1222 = vmatprep.subr.mxu0 0.0
        %1223 = vmatpush1.msra.mxu0 0.0
        %1224 = vmatprep.subr.mxu0 0.0
        %1225 = vmatpush1.msra.mxu0 0.0
        %1226 = vmatprep.subr.mxu0 0.0
        %1227 = vmatpush1.msra.mxu0 0.0
        %1228 = vmatprep.subr.mxu0 0.0
        %1229 = vmatpush1.msra.mxu0 0.0
        %1230 = vmatprep.subr.mxu0 0.0
        %1231 = vmatpush1.msra.mxu0 0.0
        %1232 = vmatprep.subr.mxu0 0.0
        %1233 = vmatpush1.msra.mxu0 0.0
        %1234 = vmatprep.subr.mxu0 0.0
        %1235 = vmatpush1.msra.mxu0 0.0
        %1236 = vmatprep.subr.mxu0 0.0
        %1237 = vmatpush1.msra.mxu0 0.0
        %1238 = vmatprep.subr.mxu0 0.0
        %1239 = vmatpush1.msra.mxu0 0.0
        %1240 = vmatprep.subr.mxu0 0.0
        %1241 = vmatpush1.msra.mxu0 0.0
        %1242 = vmatprep.subr.mxu0 0.0
        %1243 = vmatpush1.msra.mxu0 0.0
        %1244 = vmatprep.subr.mxu0 0.0
        %1245 = vmatpush1.msra.mxu0 0.0
        %1246 = vmatprep.subr.mxu0 0.0
        %1247 = vmatpush1.msra.mxu0 0.0
        %1248 = vmatprep.subr.mxu0 0.0
        %1249 = vmatpush1.msra.mxu0 0.0
        %1250 = vmatprep.subr.mxu0 0.0
        %1251 = vmatpush1.msra.mxu0 0.0
        %1252 = vmatprep.subr.mxu0 0.0
        %1253 = vmatpush1.msra.mxu0 0.0
        %1254 = vmatprep.subr.mxu0 0.0
        %1255 = vmatpush1.msra.mxu0 0.0
        %1256 = vmatprep.subr.mxu0 0.0
        %1257 = vmatpush1.msra.mxu0 0.0
        %1258 = vmatprep.subr.mxu0 0.0
        %1259 = vmatpush1.msra.mxu0 0.0
        %1260 = vmatprep.subr.mxu0 0.0
        %1261 = vmatpush1.msra.mxu0 0.0
        %1262 = vmatprep.subr.mxu0 0.0
        %1263 = vmatpush1.msra.mxu0 0.0
        %1264 = vmatprep.mubr.f32.mxu0 0.0
        %1265 = vmatmul.mubr.f32.gmra.mrb[0].mxu0 %v1115
        %v1266 = vpop.f32.mrb[0].mxu0
        %v1267 = vadd.f32 %v1111, %v1266
        %v1268 = vpop.f32.mrb[0].mxu0
        %v1269 = vadd.f32 %v1111, %v1268
        %1270 = vdwg.mxu0
        %v1275 = vcombine.low %v1196, %v1198
        %v1276 = vcombine.low %v1267, %v1269
        %1277 = vrot.lane.b32.xlu0 %v1275, 42
        %v1278 = vpop.permute.xlu0 %1277
        %1279 = vrot.lane.b32.xlu0 %v1276, 42
        %v1280 = vpop.permute.xlu0 %1279
        %v1281 = vrot.slane %v1278, 4
        %v1282 = vrot.slane %v1280, 4
        %vm1283 = vcmask 343040
        %v1284 = vsel %vm1283, %v1281, %v1278
        %v1285 = vsel %vm848, %v1281, %v1282
        %v1286 = vsel %vm1283, %v1285, %v1280
        %v1289 = vadd.f32 %v460, %v1284
        %v1290 = vadd.f32 %v461, %v1286
        %v1291 = vmul.f32 %v1289, 0.70710677
        %v1292 = vmul.f32 %v1290, 0.70710677
        %1295 = vrot.lane.b32.xlu0 %v1291, 86
        %v1296 = vpop.permute.xlu0 %1295
        %1297 = vrot.lane.b32.xlu0 %v1292, 86
        %v1298 = vpop.permute.xlu0 %1297
        %v1299 = vrot.slane %v1296, 4
        %v1300 = vrot.slane %v1298, 4
        %v1301 = vsel %vm848, %v1299, %v1300
        %v1302 = vsel %vm780, %v1296, %v1301
        %v1303 = vsel %vm780, %v1298, %v1300
        %1306 = vst [vmem:[%s438] sm:$0xff] %v1302
        %vm1307 = vcmask 130052
        %vm1308 = vmor %vm1307, %vm848
        %1309 = vst.msk [vmem:[%s438 + $0x8] sm:$0xff] %vm1308, %v1303
        %v1310 = vcombine.high %v1196, %v1198
        %v1311 = vcombine.high %v1267, %v1269
        %1314 = vst [vmem:[%s445] sm:$0xff] %v1310
        %1315 = vst.msk [vmem:[%s445 + $0x8] sm:$0xff] %vm1308, %v1311
        %s1316 = sand.u32 %s284, 1
        %s1317 = scalar_lea.sflag [#allocation3], %s1316
        %s1318 = sand.u32 %s284, 1
        %s1319 = smul.addr %s1318, 16
        %s1320 = scalar_lea.vmem [#allocation2], %s1319
        %s1321 = sand.u32 %s310, 1
        %s1322 = scalar_lea.sflag [#allocation5], %s1321
        %s1323 = sand.u32 %s310, 1
        %s1324 = smul.addr %s1323, 16
        %s1325 = scalar_lea.vmem [#allocation4], %s1324
        // Predicated region
        $region65: #{tpu_custom_call.1} parent=63 // pred_check
          %p1326 = pneg %p294
        $region66: #{tpu_custom_call.1} parent=63 // pred_check_branch
          %1328 = sbr.rel (%p1326) target = $region68
        $region67: #{tpu_custom_call.1} parent=63 // pred_region
          %s1330 = ssub.s32 256, 256
          %1331 = vsyncadd %s1317, %s1330
          %s1332 = smul.addr %s30, 4
          %s1333 = smul.addr %s1332, 64
          %s1334 = scalar_lea.hbm %s11, %s1333
          %s1336 = sshll.u32 %s1320, 4
          %s1337 = int_to_ptr.vmem [resolvable:$true] %s1336
          %1339 = dma.vmem_to_hbm [thread:$0]  %s1337, 256, %s1334, %s1317
        $region68: #{tpu_custom_call.1} parent=63 // pred_fallthru
          _
        // Predicated region
        $region69: #{tpu_custom_call.1} parent=63 // pred_check
          %p1340 = pneg %p320
        $region70: #{tpu_custom_call.1} parent=63 // pred_check_branch
          %1342 = sbr.rel (%p1340) target = $region72
        $region71: #{tpu_custom_call.1} parent=63 // pred_region
          %s1344 = ssub.s32 256, 256
          %1345 = vsyncadd %s1322, %s1344
          %s1346 = smul.addr %s30, 4
          %s1347 = smul.addr %s1346, 64
          %s1348 = scalar_lea.hbm %s12, %s1347
          %s1350 = sshll.u32 %s1325, 4
          %s1351 = int_to_ptr.vmem [resolvable:$true] %s1350
          %1353 = dma.vmem_to_hbm [thread:$0]  %s1351, 256, %s1348, %s1322
        $region72: #{tpu_custom_call.1} parent=63 // pred_fallthru
          _
      $region64: #{tpu_custom_call.1} parent=5 // pred_fallthru
        _
      %p1354 = scmp.le.s32.totalorder 2, %s25
      // Predicated region
      $region73: #{tpu_custom_call.1} parent=5 // pred_check
        %p1355 = pneg %p1354
      $region74: #{tpu_custom_call.1} parent=5 // pred_check_branch
        %1357 = sbr.rel (%p1355) target = $region76
      $region75: #{tpu_custom_call.1} parent=5 // pred_region
        %s1358 = ssub.s32 %s25, 2
        // Predicated region
        $region77: #{tpu_custom_call.1} parent=75 // pred_check
          %p1359 = pneg %p300
        $region78: #{tpu_custom_call.1} parent=75 // pred_check_branch
          %1361 = sbr.rel (%p1359) target = $region80
        $region79: #{tpu_custom_call.1} parent=75 // pred_region
          %s1362 = sand.u32 %s285, 1
          %s1363 = scalar_lea.sflag [#allocation3], %s1362
          %s1364 = sand.u32 %s285, 1
          %s1365 = smul.addr %s1364, 16
          %s1366 = scalar_lea.vmem [#allocation2], %s1365
          %1367 = dma.done %s1363, 256
        $region80: #{tpu_custom_call.1} parent=75 // pred_fallthru
          _
        // Predicated region
        $region81: #{tpu_custom_call.1} parent=75 // pred_check
          %p1368 = pneg %p326
        $region82: #{tpu_custom_call.1} parent=75 // pred_check_branch
          %1370 = sbr.rel (%p1368) target = $region84
        $region83: #{tpu_custom_call.1} parent=75 // pred_region
          %s1371 = sand.u32 %s311, 1
          %s1372 = scalar_lea.sflag [#allocation5], %s1371
          %s1373 = sand.u32 %s311, 1
          %s1374 = smul.addr %s1373, 16
          %s1375 = scalar_lea.vmem [#allocation4], %s1374
          %1376 = dma.done %s1372, 256
        $region84: #{tpu_custom_call.1} parent=75 // pred_fallthru
          _
      $region76: #{tpu_custom_call.1} parent=5 // pred_fallthru
        _
    $region6: #{tpu_custom_call.1} parent=1 // loop_footer
      %s29 = sadd.s32 1, %s25
    $region7: #{tpu_custom_call.1} parent=1 // loop_footer_branch
      %24 = sbr.rel target = $region3
    $region8: #{tpu_custom_call.1} parent=1 // loop_exit
      _
    %1377 = vsyncpa [#allocation3], 1
    %s1378 = scalar_lea.sflag [#allocation3], 1
    %1379 = vsyncpa %s1378, 1
    %1380 = vsyncpa [#allocation5], 1
    %s1381 = scalar_lea.sflag [#allocation5], 1
    %1382 = vsyncpa %s1381, 1

</llo_original>
